<compile_context>
chip_gen: v7x
topology: tpu7x:2x2x1
jax: 0.10.0
libtpu: 0.0.40
codegen_flags: <defaults>
</compile_context>

<pallas_src>
import functools

import jax
import jax.numpy as jnp
from jax.experimental import pallas as pl
from jax.experimental.pallas import tpu as pltpu


def _focal_loss_kernel(logits_ref, targets_ref, out_ref, acc_ref, *,
                       alpha, gamma, n, c, k, block_rows, tiles_per_part):
    """One (block_rows, L) row tile of the focal-loss reduction.

    k == 1 : plain layout, C classes along lanes, per-row stats (tile, 1).
    k  > 1 : packed layout, k original rows per 128-lane vreg row (L = k*c),
             per-row stats (tile, k); segmented class reductions via 0/1
             matmuls on the idle MXU.
    """
    p = pl.program_id(0)                    # partition ("parallel") index
    i = pl.program_id(1)                    # row-tile ("arbitrary") index
    n_inner = pl.num_programs(1)
    f32 = jnp.float32

    # ---- init the dense VMEM accumulator at the first reduction step ----
    @pl.when(i == 0)
    def _():
        acc_ref[...] = jnp.zeros_like(acc_ref)

    x = logits_ref[...].astype(f32)          # (TP, L) cast on the VMEM tile
    t = targets_ref[...]                     # (TP, k) int32

    if k == 1:
        # ----- plain per-row log-sum-exp over the C lanes -----
        m = jnp.max(x, axis=-1, keepdims=True)                              # (TP,1)
        # TODO(synk): on v7x with bf16 inputs, do this exp in bf16 (f32 accum)
        # to keep the single EUP off the critical path.
        e = jnp.exp(x - m)
        lse = jnp.log(jnp.sum(e, axis=-1, keepdims=True)) + m               # (TP,1)
        cls_idx = jax.lax.broadcasted_iota(jnp.int32, x.shape, 1)           # (TP,C)
        x_t = jnp.sum(jnp.where(cls_idx == t, x, 0.0),
                      axis=-1, keepdims=True)                               # (TP,1)
    else:
        L = k * c                                                           # == 128
        shift = c.bit_length() - 1                                          # log2(c)
        # 0/1 segment matrices built from iota (tiny): S (L,k), St (k,L).
        li = jax.lax.broadcasted_iota(jnp.int32, (L, k), 0)
        ji = jax.lax.broadcasted_iota(jnp.int32, (L, k), 1)
        seg_m = ((li >> shift) == ji).astype(f32)                           # (L,k)
        jt = jax.lax.broadcasted_iota(jnp.int32, (k, L), 0)
        lt = jax.lax.broadcasted_iota(jnp.int32, (k, L), 1)
        seg_mt = ((lt >> shift) == jt).astype(f32)                          # (k,L)

        lane = jax.lax.broadcasted_iota(jnp.int32, x.shape, 1)              # (TP,L)
        pos = lane & (c - 1)                                                # lane % c

        # Stabilize exp with the per-packed-row max (max over all k rows in
        # the pack).  Exact up to fp rounding unless rows packed together
        # differ by > ~87 in max logit; then the weaker row's sum-exp
        # underflows and its ce is clamped to a large finite value.
        m_row = jnp.max(x, axis=-1, keepdims=True)                          # (TP,1)
        e = jnp.exp(x - m_row)                                              # (TP,L)
        sum_seg = jnp.dot(e, seg_m, preferred_element_type=f32,
                          precision=jax.lax.Precision.HIGHEST)              # (TP,k)
        sum_seg = jnp.maximum(sum_seg, f32(1.2e-38))
        lse = jnp.log(sum_seg) + m_row                                      # (TP,k)

        # Target-class logit per packed row: broadcast targets to the lanes of
        # their segment (MXU), where-select, segment-sum (MXU).
        tb = jnp.dot(t.astype(f32), seg_mt, preferred_element_type=f32,
                     precision=jax.lax.Precision.HIGHEST)                   # (TP,L)
        hit = pos.astype(f32) == tb
        x_t = jnp.dot(jnp.where(hit, x, 0.0), seg_m,
                      preferred_element_type=f32,
                      precision=jax.lax.Precision.HIGHEST)                  # (TP,k)

    # ----- focal loss per row (all (TP, k)) -----
    ce = lse - x_t
    pt = jnp.exp(x_t - lse)                          # = exp(-ce)
    pt = jnp.clip(pt, 1e-7, 1.0 - 1e-7)
    one_minus_pt = 1.0 - pt

    g = float(gamma)
    if g == 0.0:
        w = jnp.ones_like(one_minus_pt)
    elif g == float(int(g)) and 1 <= int(g) <= 4:
        w = one_minus_pt                             # integer gamma: VPU multiplies
        for _ in range(int(g) - 1):
            w = w * one_minus_pt
    else:
        w = one_minus_pt ** f32(g)

    focal = f32(alpha) * w * ce

    # ----- mask wrapper-padded rows and the partial last block -----
    base = (p * tiles_per_part + i) * block_rows
    r_idx = jax.lax.broadcasted_iota(jnp.int32, focal.shape, 0)
    c_idx = jax.lax.broadcasted_iota(jnp.int32, focal.shape, 1)
    rows = (base + r_idx) * k + c_idx
    focal = jnp.where(rows < n, focal, 0.0)

    # ----- accumulate: pure VPU add, no per-step cross-lane reduce -----
    acc_ref[...] += focal

    # ----- epilogue: one reduce + lane-dense (8,128) output block -----
    @pl.when(i == n_inner - 1)
    def _():
        total = jnp.sum(acc_ref[...])
        r8 = jax.lax.broadcasted_iota(jnp.int32, (8, 128), 0)
        c128 = jax.lax.broadcasted_iota(jnp.int32, (8, 128), 1)
        out_ref[...] = jnp.where((r8 == 0) & (c128 == 0), total, 0.0)


def focal_loss(logits, targets, alpha=1.0, gamma=2.0, reduction="mean", *,
               block_rows=None):
    """Pallas TPU FocalLoss(alpha, gamma) forward.  reduction in {'mean','sum'}."""
    n, c = logits.shape
    targets = targets.astype(jnp.int32)

    # ---- lane packing: k rows per 128-lane vreg row when C < 128 and C | 128 ----
    k = (128 // c) if (c < 128 and 128 % c == 0) else 1
    # TODO(synk): for C < 128 that does not divide 128, pad the class dim to the
    # next divisor of 128 (with a masked lse) instead of falling back to k = 1.

    if k > 1:
        pad = (-n) % k
        if pad:   # pad batch to a multiple of k; padded rows are masked in-kernel
            logits = jnp.pad(logits, ((0, pad), (0, 0)))
            targets = jnp.pad(targets, ((0, pad),))
        n_rows = (n + pad) // k
        lanes = k * c                                   # == 128
        logits_in = logits.reshape(n_rows, lanes)        # free row-major view
        targets_in = targets.reshape(n_rows, k)
    else:
        n_rows, lanes = n, c
        logits_in = logits
        targets_in = targets.reshape(n, 1)

    # ---- VMEM budget & row-tile sizing (byte-budgeted, multiple of 8) ----
    try:
        phys = int(pltpu.get_tpu_info().vmem_capacity_bytes)
        vmem_limit = min(phys * 3 // 4, 96 * 1024 * 1024)   # ~96M v5e/v6e, ~48M v7x
    except Exception:
        vmem_limit = 40 * 1024 * 1024
    # per-logits-tile budget; leaves room for double buffering + f32 temporaries
    buf_budget = max(4 * 1024 * 1024, vmem_limit // 8)

    itemsize = jnp.dtype(logits.dtype).itemsize
    row_bytes = lanes * itemsize
    total_bytes = n_rows * row_bytes
    if block_rows is None:
        if total_bytes <= 2 * 1024 * 1024:
            block_rows = n_rows                 # tiny input: single full tile
        else:
            tr = max(8, min(buf_budget // row_bytes, pl.cdiv(n_rows, 4)))
            tr = max(8, (tr // 8) * 8)          # >= 4 tiles so DMA overlaps compute
            block_rows = n_rows if n_rows <= tr else tr
    n_tiles = pl.cdiv(n_rows, block_rows)

    # Optional 2-way split of the row tiles on a leading "parallel" axis.
    n_parts = 2 if (n_tiles >= 4 and n_tiles % 2 == 0) else 1
    tiles_per_part = n_tiles // n_parts

    kernel = functools.partial(
        _focal_loss_kernel, alpha=float(alpha), gamma=float(gamma),
        n=n, c=c, k=k, block_rows=block_rows, tiles_per_part=tiles_per_part)

    out = pl.pallas_call(
        kernel,
        out_shape=jax.ShapeDtypeStruct((8 * n_parts, 128), jnp.float32),
        grid_spec=pltpu.PrefetchScalarGridSpec(
            num_scalar_prefetch=0,
            grid=(n_parts, tiles_per_part),
            in_specs=[
                pl.BlockSpec((block_rows, lanes),
                             lambda p, i: (p * tiles_per_part + i, 0)),
                pl.BlockSpec((block_rows, k),
                             lambda p, i: (p * tiles_per_part + i, 0)),
            ],
            out_specs=pl.BlockSpec((8, 128), lambda p, i: (p, 0)),
            scratch_shapes=[pltpu.VMEM((block_rows, k), jnp.float32)],
        ),
        compiler_params=pltpu.CompilerParams(
            dimension_semantics=("parallel", "arbitrary"),
            vmem_limit_bytes=vmem_limit,
        ),
    )(logits_in, targets_in)

    total = jnp.sum(out)        # one nonzero entry per partition block
    if reduction == "mean":
        return total / jnp.float32(n)
    if reduction == "sum":
        return total
    raise NotImplementedError("reduction='none' is not implemented")


def _focal_loss_ref(logits, targets, alpha=1.0, gamma=2.0):
    # pure-JAX reference (matches PyTorch F.cross_entropy + focal weighting)
    logp = jax.nn.log_softmax(logits.astype(jnp.float32), axis=-1)
    ce = -jnp.take_along_axis(logp, targets[:, None].astype(jnp.int32), axis=-1)[:, 0]
    pt = jnp.clip(jnp.exp(-ce), 1e-7, 1.0 - 1e-7)
    return jnp.mean(alpha * (1.0 - pt) ** gamma * ce)


if __name__ == "__main__":
    key = jax.random.PRNGKey(0)
    ks = jax.random.split(key, 8)

    # case 1: tiny packed-path shape (C=16 -> 8 rows per 128-lane vreg row)
    n1, c1 = 8, 16
    x1 = jax.random.normal(ks[0], (n1, c1), dtype=jnp.float32)
    t1 = jax.random.randint(ks[1], (n1,), 0, c1, dtype=jnp.int32)
    got1 = jax.block_until_ready(focal_loss(x1, t1))
    ref1 = _focal_loss_ref(x1, t1)
    assert jnp.allclose(got1, ref1, rtol=1e-4, atol=1e-5), (got1, ref1)

    # case 2: packed path, batch padding (250 -> 256), 4 row tiles, 2 partitions
    n2, c2 = 250, 16
    x2 = jax.random.normal(ks[2], (n2, c2), dtype=jnp.float32) * 3.0
    t2 = jax.random.randint(ks[3], (n2,), 0, c2, dtype=jnp.int32)
    got2 = jax.block_until_ready(focal_loss(x2, t2, block_rows=8))
    ref2 = _focal_loss_ref(x2, t2)
    assert jnp.allclose(got2, ref2, rtol=1e-4, atol=1e-5), (got2, ref2)

    # case 3: fallback path (C does not divide 128), partial last tile,
    #         non-default alpha / non-integer gamma
    n3, c3 = 20, 130
    x3 = jax.random.normal(ks[4], (n3, c3), dtype=jnp.float32)
    t3 = jax.random.randint(ks[5], (n3,), 0, c3, dtype=jnp.int32)
    got3 = jax.block_until_ready(
        focal_loss(x3, t3, alpha=0.25, gamma=1.5, block_rows=8))
    ref3 = _focal_loss_ref(x3, t3, alpha=0.25, gamma=1.5)
    assert jnp.allclose(got3, ref3, rtol=1e-4, atol=1e-5), (got3, ref3)

    # case 4: bf16 logits through the packed path (cast happens on the tile)
    n4, c4 = 32, 16
    x4 = jax.random.normal(ks[6], (n4, c4), dtype=jnp.float32).astype(jnp.bfloat16)
    t4 = jax.random.randint(ks[7], (n4,), 0, c4, dtype=jnp.int32)
    got4 = jax.block_until_ready(focal_loss(x4, t4))
    ref4 = _focal_loss_ref(x4.astype(jnp.float32), t4)
    assert jnp.allclose(got4, ref4, rtol=2e-3, atol=1e-4), (got4, ref4)

    print("KERNEL_OK")
</pallas_src>

<mosaic_0001>
module attributes {stable_mosaic.version = 11 : i64} {
  func.func @_focal_loss_kernel(%arg0: i32, %arg1: i32, %arg2: memref<1x128xf32, #tpu.memory_space<vmem>>, %arg3: memref<1x8xi32, #tpu.memory_space<vmem>>, %arg4: memref<8x128xf32, #tpu.memory_space<vmem>>, %arg5: memref<1x8xf32, #tpu.memory_space<vmem>>) attributes {dimension_semantics = [#tpu.dimension_semantics<parallel>, #tpu.dimension_semantics<arbitrary>], iteration_bounds = array<i64: 1, 1>, scalar_prefetch = 0 : i64, scratch_operands = 1 : i64, tpu.core_type = #tpu.core_type<tc>, window_params = [{transform_indices = @transform_0, window_bounds = array<i64: 1, 128>}, {transform_indices = @transform_1, window_bounds = array<i64: 1, 8>}, {transform_indices = @transform_2, window_bounds = array<i64: 8, 128>}]} {
    %c0_i32 = arith.constant 0 : i32
    %0 = arith.cmpi eq, %arg1, %c0_i32 : i32
    %1 = arith.extui %0 : i1 to i32
    %c0_i32_0 = arith.constant 0 : i32
    %2 = arith.cmpi ne, %1, %c0_i32_0 : i32
    scf.if %2 {
      %cst_23 = arith.constant 0.000000e+00 : f32
      %73 = vector.broadcast %cst_23 : f32 to vector<1x8xf32>
      %c0_24 = arith.constant 0 : index
      %c0_25 = arith.constant 0 : index
      %74 = vector.load %arg5[%c0_24, %c0_25] : memref<1x8xf32, #tpu.memory_space<vmem>>, vector<1x8xf32>
      tpu.vector_store %arg5[%c0_24, %c0_25], %73 {strides = array<i32>} : memref<1x8xf32, #tpu.memory_space<vmem>>, vector<1x8xf32>,
    } else {
    }
    %c0 = arith.constant 0 : index
    %c0_1 = arith.constant 0 : index
    %3 = vector.load %arg2[%c0, %c0_1] : memref<1x128xf32, #tpu.memory_space<vmem>>, vector<1x128xf32>
    %c0_2 = arith.constant 0 : index
    %c0_3 = arith.constant 0 : index
    %4 = vector.load %arg3[%c0_2, %c0_3] : memref<1x8xi32, #tpu.memory_space<vmem>>, vector<1x8xi32>
    %5 = tpu.iota {dimensions = array<i32: 0>} : vector<128x8xi32>
    %6 = tpu.iota {dimensions = array<i32: 1>} : vector<128x8xi32>
    %c4_i32 = arith.constant 4 : i32
    %7 = vector.broadcast %c4_i32 : i32 to vector<128x8xi32>
    %8 = arith.shrsi %5, %7 : vector<128x8xi32>
    %9 = arith.cmpi eq, %8, %6 : vector<128x8xi32>
    %10 = arith.extui %9 : vector<128x8xi1> to vector<128x8xi32>
    %11 = arith.sitofp %10 : vector<128x8xi32> to vector<128x8xf32>
    %12 = tpu.iota {dimensions = array<i32: 0>} : vector<8x128xi32>
    %13 = tpu.iota {dimensions = array<i32: 1>} : vector<8x128xi32>
    %c4_i32_4 = arith.constant 4 : i32
    %14 = vector.broadcast %c4_i32_4 : i32 to vector<8x128xi32>
    %15 = arith.shrsi %13, %14 : vector<8x128xi32>
    %16 = arith.cmpi eq, %15, %12 : vector<8x128xi32>
    %17 = arith.extui %16 : vector<8x128xi1> to vector<8x128xi32>
    %18 = arith.sitofp %17 : vector<8x128xi32> to vector<8x128xf32>
    %19 = tpu.iota {dimensions = array<i32: 1>} : vector<1x128xi32>
    %c15_i32 = arith.constant 15 : i32
    %20 = vector.broadcast %c15_i32 : i32 to vector<1x128xi32>
    %21 = arith.andi %19, %20 : vector<1x128xi32>
    %cst = arith.constant dense<0xFF800000> : vector<1xf32>
    %22 = vector.multi_reduction <maximumf>, %3, %cst [1] : vector<1x128xf32> to vector<1xf32>
    %23 = vector.shape_cast %22 : vector<1xf32> to vector<1x1xf32>
    %24 = vector.broadcast %23 : vector<1x1xf32> to vector<1x128xf32>
    %25 = arith.subf %3, %24 : vector<1x128xf32>
    %26 = math.exp %25 : vector<1x128xf32>
    %cst_5 = arith.constant dense<0.000000e+00> : vector<1x8xf32>
    %27 = tpu.matmul %26, %11, %cst_5 {dimension_numbers = #tpu.dot_dimension_numbers<[1], [0], [0], [1], [0, 0, 1, 1], [], []>, precision = #tpu.contract_precision<fp32>} : vector<1x128xf32>, vector<128x8xf32>, vector<1x8xf32> -> vector<1x8xf32>
    %cst_6 = arith.constant 1.200000e-38 : f32
    %28 = vector.broadcast %cst_6 : f32 to vector<1x8xf32>
    %29 = arith.maximumf %27, %28 : vector<1x8xf32>
    %30 = math.log %29 : vector<1x8xf32>
    %31 = vector.broadcast %23 : vector<1x1xf32> to vector<1x8xf32>
    %32 = arith.addf %30, %31 : vector<1x8xf32>
    %33 = arith.sitofp %4 : vector<1x8xi32> to vector<1x8xf32>
    %cst_7 = arith.constant dense<0.000000e+00> : vector<1x128xf32>
    %34 = tpu.matmul %33, %18, %cst_7 {dimension_numbers = #tpu.dot_dimension_numbers<[1], [0], [0], [1], [0, 0, 1, 1], [], []>, precision = #tpu.contract_precision<fp32>} : vector<1x8xf32>, vector<8x128xf32>, vector<1x128xf32> -> vector<1x128xf32>
    %35 = arith.sitofp %21 : vector<1x128xi32> to vector<1x128xf32>
    %36 = arith.cmpf oeq, %35, %34 : vector<1x128xf32>
    %cst_8 = arith.constant 0.000000e+00 : f32
    %37 = vector.broadcast %cst_8 : f32 to vector<1x128xf32>
    %38 = arith.select %36, %3, %37 : vector<1x128xi1>, vector<1x128xf32>
    %cst_9 = arith.constant dense<0.000000e+00> : vector<1x8xf32>
    %39 = tpu.matmul %38, %11, %cst_9 {dimension_numbers = #tpu.dot_dimension_numbers<[1], [0], [0], [1], [0, 0, 1, 1], [], []>, precision = #tpu.contract_precision<fp32>} : vector<1x128xf32>, vector<128x8xf32>, vector<1x8xf32> -> vector<1x8xf32>
    %40 = arith.subf %32, %39 : vector<1x8xf32>
    %41 = arith.subf %39, %32 : vector<1x8xf32>
    %42 = math.exp %41 : vector<1x8xf32>
    %cst_10 = arith.constant 1.000000e-07 : f32
    %cst_11 = arith.constant 0.99999988 : f32
    %43 = vector.broadcast %cst_10 : f32 to vector<1x8xf32>
    %44 = arith.maximumf %43, %42 : vector<1x8xf32>
    %45 = vector.broadcast %cst_11 : f32 to vector<1x8xf32>
    %46 = arith.minimumf %45, %44 : vector<1x8xf32>
    %cst_12 = arith.constant 1.000000e+00 : f32
    %47 = vector.broadcast %cst_12 : f32 to vector<1x8xf32>
    %48 = arith.subf %47, %46 : vector<1x8xf32>
    %49 = arith.mulf %48, %48 : vector<1x8xf32>
    %cst_13 = arith.constant 1.000000e+00 : f32
    %50 = vector.broadcast %cst_13 : f32 to vector<1x8xf32>
    %51 = arith.mulf %50, %49 : vector<1x8xf32>
    %52 = arith.mulf %51, %40 : vector<1x8xf32>
    %c1_i32 = arith.constant 1 : i32
    %53 = arith.muli %arg0, %c1_i32 : i32
    %54 = arith.addi %53, %arg1 : i32
    %c1_i32_14 = arith.constant 1 : i32
    %55 = arith.muli %54, %c1_i32_14 : i32
    %56 = tpu.iota {dimensions = array<i32: 0>} : vector<1x8xi32>
    %57 = tpu.iota {dimensions = array<i32: 1>} : vector<1x8xi32>
    %58 = vector.broadcast %55 : i32 to vector<1x8xi32>
    %59 = arith.addi %58, %56 : vector<1x8xi32>
    %c8_i32 = arith.constant 8 : i32
    %60 = vector.broadcast %c8_i32 : i32 to vector<1x8xi32>
    %61 = arith.muli %59, %60 : vector<1x8xi32>
    %62 = arith.addi %61, %57 : vector<1x8xi32>
    %c8_i32_15 = arith.constant 8 : i32
    %63 = vector.broadcast %c8_i32_15 : i32 to vector<1x8xi32>
    %64 = arith.cmpi slt, %62, %63 : vector<1x8xi32>
    %cst_16 = arith.constant 0.000000e+00 : f32
    %65 = vector.broadcast %cst_16 : f32 to vector<1x8xf32>
    %66 = arith.select %64, %52, %65 : vector<1x8xi1>, vector<1x8xf32>
    %c0_17 = arith.constant 0 : index
    %c0_18 = arith.constant 0 : index
    %67 = vector.load %arg5[%c0_17, %c0_18] : memref<1x8xf32, #tpu.memory_space<vmem>>, vector<1x8xf32>
    %68 = arith.addf %67, %66 : vector<1x8xf32>
    %c0_19 = arith.constant 0 : index
    %c0_20 = arith.constant 0 : index
    %69 = vector.load %arg5[%c0_19, %c0_20] : memref<1x8xf32, #tpu.memory_space<vmem>>, vector<1x8xf32>
    tpu.vector_store %arg5[%c0_19, %c0_20], %68 {strides = array<i32>} : memref<1x8xf32, #tpu.memory_space<vmem>>, vector<1x8xf32>,
    %c0_i32_21 = arith.constant 0 : i32
    %70 = arith.cmpi eq, %arg1, %c0_i32_21 : i32
    %71 = arith.extui %70 : i1 to i32
    %c0_i32_22 = arith.constant 0 : i32
    %72 = arith.cmpi ne, %71, %c0_i32_22 : i32
    scf.if %72 {
      %c0_23 = arith.constant 0 : index
      %c0_24 = arith.constant 0 : index
      %73 = vector.load %arg5[%c0_23, %c0_24] : memref<1x8xf32, #tpu.memory_space<vmem>>, vector<1x8xf32>
      %74 = vector.shape_cast %73 : vector<1x8xf32> to vector<1x1x8xf32>
      %cst_25 = arith.constant dense<0.000000e+00> : vector<1xf32>
      %75 = vector.multi_reduction <add>, %74, %cst_25 [1, 2] : vector<1x1x8xf32> to vector<1xf32>
      %76 = vector.shape_cast %75 : vector<1xf32> to vector<1x1x1xf32>
      %77 = vector.extract %76[0, 0, 0] : f32 from vector<1x1x1xf32>
      %78 = tpu.iota {dimensions = array<i32: 0>} : vector<8x128xi32>
      %79 = tpu.iota {dimensions = array<i32: 1>} : vector<8x128xi32>
      %c0_i32_26 = arith.constant 0 : i32
      %80 = vector.broadcast %c0_i32_26 : i32 to vector<8x128xi32>
      %81 = arith.cmpi eq, %78, %80 : vector<8x128xi32>
      %c0_i32_27 = arith.constant 0 : i32
      %82 = vector.broadcast %c0_i32_27 : i32 to vector<8x128xi32>
      %83 = arith.cmpi eq, %79, %82 : vector<8x128xi32>
      %84 = arith.andi %81, %83 : vector<8x128xi1>
      %cst_28 = arith.constant 0.000000e+00 : f32
      %85 = vector.broadcast %77 : f32 to vector<8x128xf32>
      %86 = vector.broadcast %cst_28 : f32 to vector<8x128xf32>
      %87 = arith.select %84, %85, %86 : vector<8x128xi1>, vector<8x128xf32>
      %c0_29 = arith.constant 0 : index
      %c0_30 = arith.constant 0 : index
      %88 = vector.load %arg4[%c0_29, %c0_30] : memref<8x128xf32, #tpu.memory_space<vmem>>, vector<8x128xf32>
      tpu.vector_store %arg4[%c0_29, %c0_30], %87 {strides = array<i32>} : memref<8x128xf32, #tpu.memory_space<vmem>>, vector<8x128xf32>,
    } else {
    }
    return
  }
  func.func @transform_0(%arg0: i32, %arg1: i32) -> (i32, i32) {
    %c1_i32 = arith.constant 1 : i32
    %0 = arith.muli %arg0, %c1_i32 : i32
    %1 = arith.addi %0, %arg1 : i32
    %c0_i32 = arith.constant 0 : i32
    %c0_i32_0 = arith.constant 0 : i32
    return %1, %c0_i32 : i32, i32
  }
  func.func @transform_1(%arg0: i32, %arg1: i32) -> (i32, i32) {
    %c1_i32 = arith.constant 1 : i32
    %0 = arith.muli %arg0, %c1_i32 : i32
    %1 = arith.addi %0, %arg1 : i32
    %c0_i32 = arith.constant 0 : i32
    %c0_i32_0 = arith.constant 0 : i32
    return %1, %c0_i32 : i32, i32
  }
  func.func @transform_2(%arg0: i32, %arg1: i32) -> (i32, i32) {
    %c0_i32 = arith.constant 0 : i32
    %c0_i32_0 = arith.constant 0 : i32
    return %arg0, %c0_i32 : i32, i32
  }
}

</mosaic_0001>

<llo_original>
// kernel: tpu_custom_call.1
$region0: #{tpu_custom_call.1}
  #allocation0 [shape = 'u32[]', space=smem, size = 0x4, offset = 0x4, fixed_abs, tag = 'smem constant byte address 0x4 - core index']
  #allocation1 [shape = 'u32[144,128]{1,0:T(1,128)}', space=vmem, size = 0x12000, scoped, tag = 'internal scratch']
  #allocation2 [shape = 'f32[1,8]{1,0:T(1,128)}', space=vmem, size = 0x200, scoped, tag = 'scratch operand']
  %s0 = inlined_call_operand.hbm [shape: f32[1,128], index: 0, kind: input, shape index: {}]
  %s1 = inlined_call_operand.vmem [shape: s32[1,8], index: 1, kind: input, shape index: {}]
  %s2 = inlined_call_operand.hbm [shape: f32[8,128], index: 2, kind: output, shape index: {}]
  %s3 = sld [smem:[#allocation0]]
  $region30: #{tpu_custom_call.1} parent=0
    _
  %s5 = ssub.s32 1, %s3
  %s6 = scalar_select 0, %s5, %s3
  $region1: #{tpu_custom_call.1} parent=0
    #allocation3 [shape = 'u8[512]{0}', space=vmem, size = 0x400, scoped, tag = 'input window, operand 0, single buffered']
    #allocation4 [shape = 's32[1]{0}', space=sflag, size = 0x4, scoped, tag = 'scoped memory for tpu_custom_call.1']
    #allocation5 [shape = 's32[1]{0}', space=sflag, size = 0x4, scoped, tag = 'scoped memory for tpu_custom_call.1']
    #allocation6 [shape = 'u8[4096]{0}', space=vmem, size = 0x1000, scoped, tag = 'output window, operand 0, single buffered']
    %7 = vsyncpa [#allocation4], 0
    %8 = vsyncpa [#allocation5], 0
    // Predicated region
    $region2: #{tpu_custom_call.1} parent=1 // pred_check
      _
    $region3: #{tpu_custom_call.1} parent=1 // pred_check_branch
      %10 = sbr.rel (0) target = $region5
    $region4: #{tpu_custom_call.1} parent=1 // pred_region
      %s11 = sadd.s32 0, 0
      %s13 = ssub.s32 16, 16
      %14 = vsyncadd [#allocation4], %s13
      %s15 = smul.addr %s11, 16
      %s16 = scalar_lea.hbm %s0, %s15
      %s18 = sshll.u32 [#allocation3], 4
      %s19 = int_to_ptr.vmem [resolvable:$true] %s18
      %21 = dma.hbm_to_vmem [thread:$0]  %s16, 16, %s19, [#allocation4]
    $region5: #{tpu_custom_call.1} parent=1 // pred_fallthru
      _
    // Predicated region
    $region6: #{tpu_custom_call.1} parent=1 // pred_check
      _
    $region7: #{tpu_custom_call.1} parent=1 // pred_check_branch
      %23 = sbr.rel (0) target = $region9
    $region8: #{tpu_custom_call.1} parent=1 // pred_region
      %s24 = sadd.s32 0, 0
      %p25 = scmp.lt.s32.totalorder %s24, 0
      %s26 = scalar_select %p25, %s24, 0
      %s27 = scalar_lea.vmem %s1, %s26
      %s28 = sadd.s32 0, 0
    $region9: #{tpu_custom_call.1} parent=1 // pred_fallthru
      _
    // Predicated region
    $region10: #{tpu_custom_call.1} parent=1 // pred_check
      _
    $region11: #{tpu_custom_call.1} parent=1 // pred_check_branch
      %30 = sbr.rel (0) target = $region13
    $region12: #{tpu_custom_call.1} parent=1 // pred_region
      %31 = dma.done [#allocation4], 16
    $region13: #{tpu_custom_call.1} parent=1 // pred_fallthru
      _
    %s32 = sadd.s32 0, 0
    %p33 = scmp.lt.s32.totalorder %s32, 0
    %s34 = scalar_select %p33, %s32, 0
    %s35 = scalar_lea.vmem %s1, %s34
    %s36 = sadd.s32 0, 0
    %s37 = sadd.s32 0, 0
    %p38 = scmp.lt.s32.totalorder %s37, 0
    %s39 = scalar_select %p38, %s37, 0
    %s40 = scalar_lea.vmem %s1, %s39
    %s41 = sadd.s32 0, 0
    %p42 = scmp.eq.s32.totalorder 0, 0
    // Predicated region
    $region14: #{tpu_custom_call.1} parent=1 // pred_check
      %p43 = pneg %p42
    $region15: #{tpu_custom_call.1} parent=1 // pred_check_branch
      %45 = sbr.rel (%p43) target = $region17
    $region16: #{tpu_custom_call.1} parent=1 // pred_region
      %vm46 = vcmask 57344
      %47 = vst.msk [vmem:[#allocation2] sm:$0x1] %vm46, 0.0
    $region17: #{tpu_custom_call.1} parent=1 // pred_fallthru
      _
    %v48 = vld [vmem:[#allocation3] sm:$0x1]
    %v49 = vld [vmem:[%s40] sm:$0x1]
    %v50 = vlaneseq
    %v51 = vshrl.u32 %v50, 7
    %v52 = vadd.s32 %v51, 8
    %v53 = vadd.s32 %v51, 16
    %v54 = vadd.s32 %v51, 24
    %v55 = vadd.s32 %v51, 32
    %v56 = vadd.s32 %v51, 40
    %v57 = vadd.s32 %v51, 48
    %v58 = vadd.s32 %v51, 56
    %v59 = vadd.s32 %v51, 64
    %v60 = vadd.s32 %v51, 72
    %v61 = vadd.s32 %v51, 80
    %v62 = vadd.s32 %v51, 88
    %v63 = vadd.s32 %v51, 96
    %v64 = vadd.s32 %v51, 104
    %v65 = vadd.s32 %v51, 112
    %v66 = vadd.s32 %v51, 120
    %v67 = vlaneseq
    %v68 = vand.u32 %v67, 127
    %v69 = vshra.s32 %v51, 4
    %v70 = vshra.s32 %v52, 4
    %v71 = vshra.s32 %v53, 4
    %v72 = vshra.s32 %v54, 4
    %v73 = vshra.s32 %v55, 4
    %v74 = vshra.s32 %v56, 4
    %v75 = vshra.s32 %v57, 4
    %v76 = vshra.s32 %v58, 4
    %v77 = vshra.s32 %v59, 4
    %v78 = vshra.s32 %v60, 4
    %v79 = vshra.s32 %v61, 4
    %v80 = vshra.s32 %v62, 4
    %v81 = vshra.s32 %v63, 4
    %v82 = vshra.s32 %v64, 4
    %v83 = vshra.s32 %v65, 4
    %v84 = vshra.s32 %v66, 4
    %vm85 = vcmp.eq.s32.totalorder %v69, %v68
    %vm86 = vcmp.eq.s32.totalorder %v70, %v68
    %vm87 = vcmp.eq.s32.totalorder %v71, %v68
    %vm88 = vcmp.eq.s32.totalorder %v72, %v68
    %vm89 = vcmp.eq.s32.totalorder %v73, %v68
    %vm90 = vcmp.eq.s32.totalorder %v74, %v68
    %vm91 = vcmp.eq.s32.totalorder %v75, %v68
    %vm92 = vcmp.eq.s32.totalorder %v76, %v68
    %vm93 = vcmp.eq.s32.totalorder %v77, %v68
    %vm94 = vcmp.eq.s32.totalorder %v78, %v68
    %vm95 = vcmp.eq.s32.totalorder %v79, %v68
    %vm96 = vcmp.eq.s32.totalorder %v80, %v68
    %vm97 = vcmp.eq.s32.totalorder %v81, %v68
    %vm98 = vcmp.eq.s32.totalorder %v82, %v68
    %vm99 = vcmp.eq.s32.totalorder %v83, %v68
    %vm100 = vcmp.eq.s32.totalorder %v84, %v68
    %v101 = vsel %vm85, 1, 0
    %v102 = vsel %vm86, 1, 0
    %v103 = vsel %vm87, 1, 0
    %v104 = vsel %vm88, 1, 0
    %v105 = vsel %vm89, 1, 0
    %v106 = vsel %vm90, 1, 0
    %v107 = vsel %vm91, 1, 0
    %v108 = vsel %vm92, 1, 0
    %v109 = vsel %vm93, 1, 0
    %v110 = vsel %vm94, 1, 0
    %v111 = vsel %vm95, 1, 0
    %v112 = vsel %vm96, 1, 0
    %v113 = vsel %vm97, 1, 0
    %v114 = vsel %vm98, 1, 0
    %v115 = vsel %vm99, 1, 0
    %v116 = vsel %vm100, 1, 0
    %v117 = vcvt.s32.f32 %v101
    %v118 = vcvt.s32.f32 %v102
    %v119 = vcvt.s32.f32 %v103
    %v120 = vcvt.s32.f32 %v104
    %v121 = vcvt.s32.f32 %v105
    %v122 = vcvt.s32.f32 %v106
    %v123 = vcvt.s32.f32 %v107
    %v124 = vcvt.s32.f32 %v108
    %v125 = vcvt.s32.f32 %v109
    %v126 = vcvt.s32.f32 %v110
    %v127 = vcvt.s32.f32 %v111
    %v128 = vcvt.s32.f32 %v112
    %v129 = vcvt.s32.f32 %v113
    %v130 = vcvt.s32.f32 %v114
    %v131 = vcvt.s32.f32 %v115
    %v132 = vcvt.s32.f32 %v116
    %v133 = vshra.s32 %v68, 4
    %vm134 = vcmp.eq.s32.totalorder %v133, %v51
    %v135 = vsel %vm134, 1, 0
    %v136 = vcvt.s32.f32 %v135
    %v137 = vand.u32 %v68, 15
    %vm138 = vcmask 1040384
    %v139 = vsel %vm138, %v48, -inf
    %140 = vmax.xlane.f32.xlu0 %v139
    %v141 = vpop.xlane.xlu0 %140
    %v142 = vsub.f32 %v48, %v141
    %v143 = vmul.f32 %v142, 1.442695
    %v144 = vpow.pop %v143
    %145 = vmatprep.subr.mxu0 0.0
    %v146 = vand.u32 %v117, 4294901760
    %147 = vmatpush1.msra.mxu0 %v146
    %148 = vmatprep.subr.mxu0 0.0
    %v149 = vand.u32 %v118, 4294901760
    %150 = vmatpush1.msra.mxu0 %v149
    %151 = vmatprep.subr.mxu0 0.0
    %v152 = vand.u32 %v119, 4294901760
    %153 = vmatpush1.msra.mxu0 %v152
    %154 = vmatprep.subr.mxu0 0.0
    %v155 = vand.u32 %v120, 4294901760
    %156 = vmatpush1.msra.mxu0 %v155
    %157 = vmatprep.subr.mxu0 0.0
    %v158 = vand.u32 %v121, 4294901760
    %159 = vmatpush1.msra.mxu0 %v158
    %160 = vmatprep.subr.mxu0 0.0
    %v161 = vand.u32 %v122, 4294901760
    %162 = vmatpush1.msra.mxu0 %v161
    %163 = vmatprep.subr.mxu0 0.0
    %v164 = vand.u32 %v123, 4294901760
    %165 = vmatpush1.msra.mxu0 %v164
    %166 = vmatprep.subr.mxu0 0.0
    %v167 = vand.u32 %v124, 4294901760
    %168 = vmatpush1.msra.mxu0 %v167
    %169 = vmatprep.subr.mxu0 0.0
    %v170 = vand.u32 %v125, 4294901760
    %171 = vmatpush1.msra.mxu0 %v170
    %172 = vmatprep.subr.mxu0 0.0
    %v173 = vand.u32 %v126, 4294901760
    %174 = vmatpush1.msra.mxu0 %v173
    %175 = vmatprep.subr.mxu0 0.0
    %v176 = vand.u32 %v127, 4294901760
    %177 = vmatpush1.msra.mxu0 %v176
    %178 = vmatprep.subr.mxu0 0.0
    %v179 = vand.u32 %v128, 4294901760
    %180 = vmatpush1.msra.mxu0 %v179
    %181 = vmatprep.subr.mxu0 0.0
    %v182 = vand.u32 %v129, 4294901760
    %183 = vmatpush1.msra.mxu0 %v182
    %184 = vmatprep.subr.mxu0 0.0
    %v185 = vand.u32 %v130, 4294901760
    %186 = vmatpush1.msra.mxu0 %v185
    %187 = vmatprep.subr.mxu0 0.0
    %v188 = vand.u32 %v131, 4294901760
    %189 = vmatpush1.msra.mxu0 %v188
    %190 = vmatprep.subr.mxu0 0.0
    %v191 = vand.u32 %v132, 4294901760
    %192 = vmatpush1.msra.mxu0 %v191
    %193 = vmatprep.subr.mxu0 0.0
    %194 = vmatpush1.msra.mxu0 0.0
    %195 = vmatprep.subr.mxu0 0.0
    %196 = vmatpush1.msra.mxu0 0.0
    %197 = vmatprep.subr.mxu0 0.0
    %198 = vmatpush1.msra.mxu0 0.0
    %199 = vmatprep.subr.mxu0 0.0
    %200 = vmatpush1.msra.mxu0 0.0
    %201 = vmatprep.subr.mxu0 0.0
    %202 = vmatpush1.msra.mxu0 0.0
    %203 = vmatprep.subr.mxu0 0.0
    %204 = vmatpush1.msra.mxu0 0.0
    %205 = vmatprep.subr.mxu0 0.0
    %206 = vmatpush1.msra.mxu0 0.0
    %207 = vmatprep.subr.mxu0 0.0
    %208 = vmatpush1.msra.mxu0 0.0
    %209 = vmatprep.subr.mxu0 0.0
    %210 = vmatpush1.msra.mxu0 0.0
    %211 = vmatprep.subr.mxu0 0.0
    %212 = vmatpush1.msra.mxu0 0.0
    %213 = vmatprep.subr.mxu0 0.0
    %214 = vmatpush1.msra.mxu0 0.0
    %215 = vmatprep.subr.mxu0 0.0
    %216 = vmatpush1.msra.mxu0 0.0
    %217 = vmatprep.subr.mxu0 0.0
    %218 = vmatpush1.msra.mxu0 0.0
    %219 = vmatprep.subr.mxu0 0.0
    %220 = vmatpush1.msra.mxu0 0.0
    %221 = vmatprep.subr.mxu0 0.0
    %222 = vmatpush1.msra.mxu0 0.0
    %223 = vmatprep.subr.mxu0 0.0
    %224 = vmatpush1.msra.mxu0 0.0
    %225 = vmatprep.mubr.f32.mxu0 0.0
    %v226 = vand.u32 %v144, 4294901760
    %v227 = vsub.f32 %v144, %v226
    %v228 = vand.u32 %v227, 4294901760
    %v229 = vsub.f32 %v227, %v228
    %v230 = vand.u32 %v229, 4294901760
    %231 = vmatmul.mubr.f32.gmra.mrb[0].mxu0 %v230
    %v232 = vpop.f32.mrb[0].mxu0
    %v233 = vadd.f32 0.0, %v232
    %v234 = vpop.f32.mrb[0].mxu0
    %235 = vdwg.mxu0
    %236 = vmatprep.subr.mxu0 0.0
    %v237 = vand.u32 %v117, 4294901760
    %v238 = vsub.f32 %v117, %v237
    %v239 = vand.u32 %v238, 4294901760
    %v240 = vsub.f32 %v238, %v239
    %v241 = vand.u32 %v240, 4294901760
    %242 = vmatpush1.msra.mxu0 %v241
    %243 = vmatprep.subr.mxu0 0.0
    %v244 = vand.u32 %v118, 4294901760
    %v245 = vsub.f32 %v118, %v244
    %v246 = vand.u32 %v245, 4294901760
    %v247 = vsub.f32 %v245, %v246
    %v248 = vand.u32 %v247, 4294901760
    %249 = vmatpush1.msra.mxu0 %v248
    %250 = vmatprep.subr.mxu0 0.0
    %v251 = vand.u32 %v119, 4294901760
    %v252 = vsub.f32 %v119, %v251
    %v253 = vand.u32 %v252, 4294901760
    %v254 = vsub.f32 %v252, %v253
    %v255 = vand.u32 %v254, 4294901760
    %256 = vmatpush1.msra.mxu0 %v255
    %257 = vmatprep.subr.mxu0 0.0
    %v258 = vand.u32 %v120, 4294901760
    %v259 = vsub.f32 %v120, %v258
    %v260 = vand.u32 %v259, 4294901760
    %v261 = vsub.f32 %v259, %v260
    %v262 = vand.u32 %v261, 4294901760
    %263 = vmatpush1.msra.mxu0 %v262
    %264 = vmatprep.subr.mxu0 0.0
    %v265 = vand.u32 %v121, 4294901760
    %v266 = vsub.f32 %v121, %v265
    %v267 = vand.u32 %v266, 4294901760
    %v268 = vsub.f32 %v266, %v267
    %v269 = vand.u32 %v268, 4294901760
    %270 = vmatpush1.msra.mxu0 %v269
    %271 = vmatprep.subr.mxu0 0.0
    %v272 = vand.u32 %v122, 4294901760
    %v273 = vsub.f32 %v122, %v272
    %v274 = vand.u32 %v273, 4294901760
    %v275 = vsub.f32 %v273, %v274
    %v276 = vand.u32 %v275, 4294901760
    %277 = vmatpush1.msra.mxu0 %v276
    %278 = vmatprep.subr.mxu0 0.0
    %v279 = vand.u32 %v123, 4294901760
    %v280 = vsub.f32 %v123, %v279
    %v281 = vand.u32 %v280, 4294901760
    %v282 = vsub.f32 %v280, %v281
    %v283 = vand.u32 %v282, 4294901760
    %284 = vmatpush1.msra.mxu0 %v283
    %285 = vmatprep.subr.mxu0 0.0
    %v286 = vand.u32 %v124, 4294901760
    %v287 = vsub.f32 %v124, %v286
    %v288 = vand.u32 %v287, 4294901760
    %v289 = vsub.f32 %v287, %v288
    %v290 = vand.u32 %v289, 4294901760
    %291 = vmatpush1.msra.mxu0 %v290
    %292 = vmatprep.subr.mxu0 0.0
    %v293 = vand.u32 %v125, 4294901760
    %v294 = vsub.f32 %v125, %v293
    %v295 = vand.u32 %v294, 4294901760
    %v296 = vsub.f32 %v294, %v295
    %v297 = vand.u32 %v296, 4294901760
    %298 = vmatpush1.msra.mxu0 %v297
    %299 = vmatprep.subr.mxu0 0.0
    %v300 = vand.u32 %v126, 4294901760
    %v301 = vsub.f32 %v126, %v300
    %v302 = vand.u32 %v301, 4294901760
    %v303 = vsub.f32 %v301, %v302
    %v304 = vand.u32 %v303, 4294901760
    %305 = vmatpush1.msra.mxu0 %v304
    %306 = vmatprep.subr.mxu0 0.0
    %v307 = vand.u32 %v127, 4294901760
    %v308 = vsub.f32 %v127, %v307
    %v309 = vand.u32 %v308, 4294901760
    %v310 = vsub.f32 %v308, %v309
    %v311 = vand.u32 %v310, 4294901760
    %312 = vmatpush1.msra.mxu0 %v311
    %313 = vmatprep.subr.mxu0 0.0
    %v314 = vand.u32 %v128, 4294901760
    %v315 = vsub.f32 %v128, %v314
    %v316 = vand.u32 %v315, 4294901760
    %v317 = vsub.f32 %v315, %v316
    %v318 = vand.u32 %v317, 4294901760
    %319 = vmatpush1.msra.mxu0 %v318
    %320 = vmatprep.subr.mxu0 0.0
    %v321 = vand.u32 %v129, 4294901760
    %v322 = vsub.f32 %v129, %v321
    %v323 = vand.u32 %v322, 4294901760
    %v324 = vsub.f32 %v322, %v323
    %v325 = vand.u32 %v324, 4294901760
    %326 = vmatpush1.msra.mxu0 %v325
    %327 = vmatprep.subr.mxu0 0.0
    %v328 = vand.u32 %v130, 4294901760
    %v329 = vsub.f32 %v130, %v328
    %v330 = vand.u32 %v329, 4294901760
    %v331 = vsub.f32 %v329, %v330
    %v332 = vand.u32 %v331, 4294901760
    %333 = vmatpush1.msra.mxu0 %v332
    %334 = vmatprep.subr.mxu0 0.0
    %v335 = vand.u32 %v131, 4294901760
    %v336 = vsub.f32 %v131, %v335
    %v337 = vand.u32 %v336, 4294901760
    %v338 = vsub.f32 %v336, %v337
    %v339 = vand.u32 %v338, 4294901760
    %340 = vmatpush1.msra.mxu0 %v339
    %341 = vmatprep.subr.mxu0 0.0
    %v342 = vand.u32 %v132, 4294901760
    %v343 = vsub.f32 %v132, %v342
    %v344 = vand.u32 %v343, 4294901760
    %v345 = vsub.f32 %v343, %v344
    %v346 = vand.u32 %v345, 4294901760
    %347 = vmatpush1.msra.mxu0 %v346
    %348 = vmatprep.subr.mxu0 0.0
    %349 = vmatpush1.msra.mxu0 0.0
    %350 = vmatprep.subr.mxu0 0.0
    %351 = vmatpush1.msra.mxu0 0.0
    %352 = vmatprep.subr.mxu0 0.0
    %353 = vmatpush1.msra.mxu0 0.0
    %354 = vmatprep.subr.mxu0 0.0
    %355 = vmatpush1.msra.mxu0 0.0
    %356 = vmatprep.subr.mxu0 0.0
    %357 = vmatpush1.msra.mxu0 0.0
    %358 = vmatprep.subr.mxu0 0.0
    %359 = vmatpush1.msra.mxu0 0.0
    %360 = vmatprep.subr.mxu0 0.0
    %361 = vmatpush1.msra.mxu0 0.0
    %362 = vmatprep.subr.mxu0 0.0
    %363 = vmatpush1.msra.mxu0 0.0
    %364 = vmatprep.subr.mxu0 0.0
    %365 = vmatpush1.msra.mxu0 0.0
    %366 = vmatprep.subr.mxu0 0.0
    %367 = vmatpush1.msra.mxu0 0.0
    %368 = vmatprep.subr.mxu0 0.0
    %369 = vmatpush1.msra.mxu0 0.0
    %370 = vmatprep.subr.mxu0 0.0
    %371 = vmatpush1.msra.mxu0 0.0
    %372 = vmatprep.subr.mxu0 0.0
    %373 = vmatpush1.msra.mxu0 0.0
    %374 = vmatprep.subr.mxu0 0.0
    %375 = vmatpush1.msra.mxu0 0.0
    %376 = vmatprep.subr.mxu0 0.0
    %377 = vmatpush1.msra.mxu0 0.0
    %378 = vmatprep.subr.mxu0 0.0
    %379 = vmatpush1.msra.mxu0 0.0
    %380 = vmatprep.mubr.f32.mxu0 0.0
    %v381 = vand.u32 %v144, 4294901760
    %382 = vmatmul.mubr.f32.gmra.mrb[0].mxu0 %v381
    %v383 = vpop.f32.mrb[0].mxu0
    %v384 = vadd.f32 %v233, %v383
    %v385 = vpop.f32.mrb[0].mxu0
    %386 = vdwg.mxu0
    %387 = vmatprep.subr.mxu0 0.0
    %v388 = vand.u32 %v117, 4294901760
    %v389 = vsub.f32 %v117, %v388
    %390 = vmatpush1.msra.mxu0 %v389
    %391 = vmatprep.subr.mxu0 0.0
    %v392 = vand.u32 %v118, 4294901760
    %v393 = vsub.f32 %v118, %v392
    %394 = vmatpush1.msra.mxu0 %v393
    %395 = vmatprep.subr.mxu0 0.0
    %v396 = vand.u32 %v119, 4294901760
    %v397 = vsub.f32 %v119, %v396
    %398 = vmatpush1.msra.mxu0 %v397
    %399 = vmatprep.subr.mxu0 0.0
    %v400 = vand.u32 %v120, 4294901760
    %v401 = vsub.f32 %v120, %v400
    %402 = vmatpush1.msra.mxu0 %v401
    %403 = vmatprep.subr.mxu0 0.0
    %v404 = vand.u32 %v121, 4294901760
    %v405 = vsub.f32 %v121, %v404
    %406 = vmatpush1.msra.mxu0 %v405
    %407 = vmatprep.subr.mxu0 0.0
    %v408 = vand.u32 %v122, 4294901760
    %v409 = vsub.f32 %v122, %v408
    %410 = vmatpush1.msra.mxu0 %v409
    %411 = vmatprep.subr.mxu0 0.0
    %v412 = vand.u32 %v123, 4294901760
    %v413 = vsub.f32 %v123, %v412
    %414 = vmatpush1.msra.mxu0 %v413
    %415 = vmatprep.subr.mxu0 0.0
    %v416 = vand.u32 %v124, 4294901760
    %v417 = vsub.f32 %v124, %v416
    %418 = vmatpush1.msra.mxu0 %v417
    %419 = vmatprep.subr.mxu0 0.0
    %v420 = vand.u32 %v125, 4294901760
    %v421 = vsub.f32 %v125, %v420
    %422 = vmatpush1.msra.mxu0 %v421
    %423 = vmatprep.subr.mxu0 0.0
    %v424 = vand.u32 %v126, 4294901760
    %v425 = vsub.f32 %v126, %v424
    %426 = vmatpush1.msra.mxu0 %v425
    %427 = vmatprep.subr.mxu0 0.0
    %v428 = vand.u32 %v127, 4294901760
    %v429 = vsub.f32 %v127, %v428
    %430 = vmatpush1.msra.mxu0 %v429
    %431 = vmatprep.subr.mxu0 0.0
    %v432 = vand.u32 %v128, 4294901760
    %v433 = vsub.f32 %v128, %v432
    %434 = vmatpush1.msra.mxu0 %v433
    %435 = vmatprep.subr.mxu0 0.0
    %v436 = vand.u32 %v129, 4294901760
    %v437 = vsub.f32 %v129, %v436
    %438 = vmatpush1.msra.mxu0 %v437
    %439 = vmatprep.subr.mxu0 0.0
    %v440 = vand.u32 %v130, 4294901760
    %v441 = vsub.f32 %v130, %v440
    %442 = vmatpush1.msra.mxu0 %v441
    %443 = vmatprep.subr.mxu0 0.0
    %v444 = vand.u32 %v131, 4294901760
    %v445 = vsub.f32 %v131, %v444
    %446 = vmatpush1.msra.mxu0 %v445
    %447 = vmatprep.subr.mxu0 0.0
    %v448 = vand.u32 %v132, 4294901760
    %v449 = vsub.f32 %v132, %v448
    %450 = vmatpush1.msra.mxu0 %v449
    %451 = vmatprep.subr.mxu0 0.0
    %452 = vmatpush1.msra.mxu0 0.0
    %453 = vmatprep.subr.mxu0 0.0
    %454 = vmatpush1.msra.mxu0 0.0
    %455 = vmatprep.subr.mxu0 0.0
    %456 = vmatpush1.msra.mxu0 0.0
    %457 = vmatprep.subr.mxu0 0.0
    %458 = vmatpush1.msra.mxu0 0.0
    %459 = vmatprep.subr.mxu0 0.0
    %460 = vmatpush1.msra.mxu0 0.0
    %461 = vmatprep.subr.mxu0 0.0
    %462 = vmatpush1.msra.mxu0 0.0
    %463 = vmatprep.subr.mxu0 0.0
    %464 = vmatpush1.msra.mxu0 0.0
    %465 = vmatprep.subr.mxu0 0.0
    %466 = vmatpush1.msra.mxu0 0.0
    %467 = vmatprep.subr.mxu0 0.0
    %468 = vmatpush1.msra.mxu0 0.0
    %469 = vmatprep.subr.mxu0 0.0
    %470 = vmatpush1.msra.mxu0 0.0
    %471 = vmatprep.subr.mxu0 0.0
    %472 = vmatpush1.msra.mxu0 0.0
    %473 = vmatprep.subr.mxu0 0.0
    %474 = vmatpush1.msra.mxu0 0.0
    %475 = vmatprep.subr.mxu0 0.0
    %476 = vmatpush1.msra.mxu0 0.0
    %477 = vmatprep.subr.mxu0 0.0
    %478 = vmatpush1.msra.mxu0 0.0
    %479 = vmatprep.subr.mxu0 0.0
    %480 = vmatpush1.msra.mxu0 0.0
    %481 = vmatprep.subr.mxu0 0.0
    %482 = vmatpush1.msra.mxu0 0.0
    %483 = vmatprep.mubr.f32.mxu0 0.0
    %v484 = vand.u32 %v144, 4294901760
    %v485 = vsub.f32 %v144, %v484
    %486 = vmatmul.mubr.f32.gmra.mrb[0].mxu0 %v485
    %v487 = vpop.f32.mrb[0].mxu0
    %v488 = vadd.f32 %v384, %v487
    %v489 = vpop.f32.mrb[0].mxu0
    %490 = vdwg.mxu0
    %491 = vmatprep.subr.mxu0 0.0
    %v492 = vand.u32 %v117, 4294901760
    %493 = vmatpush1.msra.mxu0 %v492
    %494 = vmatprep.subr.mxu0 0.0
    %v495 = vand.u32 %v118, 4294901760
    %496 = vmatpush1.msra.mxu0 %v495
    %497 = vmatprep.subr.mxu0 0.0
    %v498 = vand.u32 %v119, 4294901760
    %499 = vmatpush1.msra.mxu0 %v498
    %500 = vmatprep.subr.mxu0 0.0
    %v501 = vand.u32 %v120, 4294901760
    %502 = vmatpush1.msra.mxu0 %v501
    %503 = vmatprep.subr.mxu0 0.0
    %v504 = vand.u32 %v121, 4294901760
    %505 = vmatpush1.msra.mxu0 %v504
    %506 = vmatprep.subr.mxu0 0.0
    %v507 = vand.u32 %v122, 4294901760
    %508 = vmatpush1.msra.mxu0 %v507
    %509 = vmatprep.subr.mxu0 0.0
    %v510 = vand.u32 %v123, 4294901760
    %511 = vmatpush1.msra.mxu0 %v510
    %512 = vmatprep.subr.mxu0 0.0
    %v513 = vand.u32 %v124, 4294901760
    %514 = vmatpush1.msra.mxu0 %v513
    %515 = vmatprep.subr.mxu0 0.0
    %v516 = vand.u32 %v125, 4294901760
    %517 = vmatpush1.msra.mxu0 %v516
    %518 = vmatprep.subr.mxu0 0.0
    %v519 = vand.u32 %v126, 4294901760
    %520 = vmatpush1.msra.mxu0 %v519
    %521 = vmatprep.subr.mxu0 0.0
    %v522 = vand.u32 %v127, 4294901760
    %523 = vmatpush1.msra.mxu0 %v522
    %524 = vmatprep.subr.mxu0 0.0
    %v525 = vand.u32 %v128, 4294901760
    %526 = vmatpush1.msra.mxu0 %v525
    %527 = vmatprep.subr.mxu0 0.0
    %v528 = vand.u32 %v129, 4294901760
    %529 = vmatpush1.msra.mxu0 %v528
    %530 = vmatprep.subr.mxu0 0.0
    %v531 = vand.u32 %v130, 4294901760
    %532 = vmatpush1.msra.mxu0 %v531
    %533 = vmatprep.subr.mxu0 0.0
    %v534 = vand.u32 %v131, 4294901760
    %535 = vmatpush1.msra.mxu0 %v534
    %536 = vmatprep.subr.mxu0 0.0
    %v537 = vand.u32 %v132, 4294901760
    %538 = vmatpush1.msra.mxu0 %v537
    %539 = vmatprep.subr.mxu0 0.0
    %540 = vmatpush1.msra.mxu0 0.0
    %541 = vmatprep.subr.mxu0 0.0
    %542 = vmatpush1.msra.mxu0 0.0
    %543 = vmatprep.subr.mxu0 0.0
    %544 = vmatpush1.msra.mxu0 0.0
    %545 = vmatprep.subr.mxu0 0.0
    %546 = vmatpush1.msra.mxu0 0.0
    %547 = vmatprep.subr.mxu0 0.0
    %548 = vmatpush1.msra.mxu0 0.0
    %549 = vmatprep.subr.mxu0 0.0
    %550 = vmatpush1.msra.mxu0 0.0
    %551 = vmatprep.subr.mxu0 0.0
    %552 = vmatpush1.msra.mxu0 0.0
    %553 = vmatprep.subr.mxu0 0.0
    %554 = vmatpush1.msra.mxu0 0.0
    %555 = vmatprep.subr.mxu0 0.0
    %556 = vmatpush1.msra.mxu0 0.0
    %557 = vmatprep.subr.mxu0 0.0
    %558 = vmatpush1.msra.mxu0 0.0
    %559 = vmatprep.subr.mxu0 0.0
    %560 = vmatpush1.msra.mxu0 0.0
    %561 = vmatprep.subr.mxu0 0.0
    %562 = vmatpush1.msra.mxu0 0.0
    %563 = vmatprep.subr.mxu0 0.0
    %564 = vmatpush1.msra.mxu0 0.0
    %565 = vmatprep.subr.mxu0 0.0
    %566 = vmatpush1.msra.mxu0 0.0
    %567 = vmatprep.subr.mxu0 0.0
    %568 = vmatpush1.msra.mxu0 0.0
    %569 = vmatprep.subr.mxu0 0.0
    %570 = vmatpush1.msra.mxu0 0.0
    %571 = vmatprep.mubr.f32.mxu0 0.0
    %v572 = vand.u32 %v144, 4294901760
    %v573 = vsub.f32 %v144, %v572
    %v574 = vand.u32 %v573, 4294901760
    %575 = vmatmul.mubr.f32.gmra.mrb[0].mxu0 %v574
    %v576 = vpop.f32.mrb[0].mxu0
    %v577 = vadd.f32 %v488, %v576
    %v578 = vpop.f32.mrb[0].mxu0
    %579 = vdwg.mxu0
    %580 = vmatprep.subr.mxu0 0.0
    %v581 = vand.u32 %v117, 4294901760
    %v582 = vsub.f32 %v117, %v581
    %v583 = vand.u32 %v582, 4294901760
    %584 = vmatpush1.msra.mxu0 %v583
    %585 = vmatprep.subr.mxu0 0.0
    %v586 = vand.u32 %v118, 4294901760
    %v587 = vsub.f32 %v118, %v586
    %v588 = vand.u32 %v587, 4294901760
    %589 = vmatpush1.msra.mxu0 %v588
    %590 = vmatprep.subr.mxu0 0.0
    %v591 = vand.u32 %v119, 4294901760
    %v592 = vsub.f32 %v119, %v591
    %v593 = vand.u32 %v592, 4294901760
    %594 = vmatpush1.msra.mxu0 %v593
    %595 = vmatprep.subr.mxu0 0.0
    %v596 = vand.u32 %v120, 4294901760
    %v597 = vsub.f32 %v120, %v596
    %v598 = vand.u32 %v597, 4294901760
    %599 = vmatpush1.msra.mxu0 %v598
    %600 = vmatprep.subr.mxu0 0.0
    %v601 = vand.u32 %v121, 4294901760
    %v602 = vsub.f32 %v121, %v601
    %v603 = vand.u32 %v602, 4294901760
    %604 = vmatpush1.msra.mxu0 %v603
    %605 = vmatprep.subr.mxu0 0.0
    %v606 = vand.u32 %v122, 4294901760
    %v607 = vsub.f32 %v122, %v606
    %v608 = vand.u32 %v607, 4294901760
    %609 = vmatpush1.msra.mxu0 %v608
    %610 = vmatprep.subr.mxu0 0.0
    %v611 = vand.u32 %v123, 4294901760
    %v612 = vsub.f32 %v123, %v611
    %v613 = vand.u32 %v612, 4294901760
    %614 = vmatpush1.msra.mxu0 %v613
    %615 = vmatprep.subr.mxu0 0.0
    %v616 = vand.u32 %v124, 4294901760
    %v617 = vsub.f32 %v124, %v616
    %v618 = vand.u32 %v617, 4294901760
    %619 = vmatpush1.msra.mxu0 %v618
    %620 = vmatprep.subr.mxu0 0.0
    %v621 = vand.u32 %v125, 4294901760
    %v622 = vsub.f32 %v125, %v621
    %v623 = vand.u32 %v622, 4294901760
    %624 = vmatpush1.msra.mxu0 %v623
    %625 = vmatprep.subr.mxu0 0.0
    %v626 = vand.u32 %v126, 4294901760
    %v627 = vsub.f32 %v126, %v626
    %v628 = vand.u32 %v627, 4294901760
    %629 = vmatpush1.msra.mxu0 %v628
    %630 = vmatprep.subr.mxu0 0.0
    %v631 = vand.u32 %v127, 4294901760
    %v632 = vsub.f32 %v127, %v631
    %v633 = vand.u32 %v632, 4294901760
    %634 = vmatpush1.msra.mxu0 %v633
    %635 = vmatprep.subr.mxu0 0.0
    %v636 = vand.u32 %v128, 4294901760
    %v637 = vsub.f32 %v128, %v636
    %v638 = vand.u32 %v637, 4294901760
    %639 = vmatpush1.msra.mxu0 %v638
    %640 = vmatprep.subr.mxu0 0.0
    %v641 = vand.u32 %v129, 4294901760
    %v642 = vsub.f32 %v129, %v641
    %v643 = vand.u32 %v642, 4294901760
    %644 = vmatpush1.msra.mxu0 %v643
    %645 = vmatprep.subr.mxu0 0.0
    %v646 = vand.u32 %v130, 4294901760
    %v647 = vsub.f32 %v130, %v646
    %v648 = vand.u32 %v647, 4294901760
    %649 = vmatpush1.msra.mxu0 %v648
    %650 = vmatprep.subr.mxu0 0.0
    %v651 = vand.u32 %v131, 4294901760
    %v652 = vsub.f32 %v131, %v651
    %v653 = vand.u32 %v652, 4294901760
    %654 = vmatpush1.msra.mxu0 %v653
    %655 = vmatprep.subr.mxu0 0.0
    %v656 = vand.u32 %v132, 4294901760
    %v657 = vsub.f32 %v132, %v656
    %v658 = vand.u32 %v657, 4294901760
    %659 = vmatpush1.msra.mxu0 %v658
    %660 = vmatprep.subr.mxu0 0.0
    %661 = vmatpush1.msra.mxu0 0.0
    %662 = vmatprep.subr.mxu0 0.0
    %663 = vmatpush1.msra.mxu0 0.0
    %664 = vmatprep.subr.mxu0 0.0
    %665 = vmatpush1.msra.mxu0 0.0
    %666 = vmatprep.subr.mxu0 0.0
    %667 = vmatpush1.msra.mxu0 0.0
    %668 = vmatprep.subr.mxu0 0.0
    %669 = vmatpush1.msra.mxu0 0.0
    %670 = vmatprep.subr.mxu0 0.0
    %671 = vmatpush1.msra.mxu0 0.0
    %672 = vmatprep.subr.mxu0 0.0
    %673 = vmatpush1.msra.mxu0 0.0
    %674 = vmatprep.subr.mxu0 0.0
    %675 = vmatpush1.msra.mxu0 0.0
    %676 = vmatprep.subr.mxu0 0.0
    %677 = vmatpush1.msra.mxu0 0.0
    %678 = vmatprep.subr.mxu0 0.0
    %679 = vmatpush1.msra.mxu0 0.0
    %680 = vmatprep.subr.mxu0 0.0
    %681 = vmatpush1.msra.mxu0 0.0
    %682 = vmatprep.subr.mxu0 0.0
    %683 = vmatpush1.msra.mxu0 0.0
    %684 = vmatprep.subr.mxu0 0.0
    %685 = vmatpush1.msra.mxu0 0.0
    %686 = vmatprep.subr.mxu0 0.0
    %687 = vmatpush1.msra.mxu0 0.0
    %688 = vmatprep.subr.mxu0 0.0
    %689 = vmatpush1.msra.mxu0 0.0
    %690 = vmatprep.subr.mxu0 0.0
    %691 = vmatpush1.msra.mxu0 0.0
    %692 = vmatprep.mubr.f32.mxu0 0.0
    %v693 = vand.u32 %v144, 4294901760
    %694 = vmatmul.mubr.f32.gmra.mrb[0].mxu0 %v693
    %v695 = vpop.f32.mrb[0].mxu0
    %v696 = vadd.f32 %v577, %v695
    %v697 = vpop.f32.mrb[0].mxu0
    %698 = vdwg.mxu0
    %699 = vmatprep.subr.mxu0 0.0
    %v700 = vand.u32 %v117, 4294901760
    %701 = vmatpush1.msra.mxu0 %v700
    %702 = vmatprep.subr.mxu0 0.0
    %v703 = vand.u32 %v118, 4294901760
    %704 = vmatpush1.msra.mxu0 %v703
    %705 = vmatprep.subr.mxu0 0.0
    %v706 = vand.u32 %v119, 4294901760
    %707 = vmatpush1.msra.mxu0 %v706
    %708 = vmatprep.subr.mxu0 0.0
    %v709 = vand.u32 %v120, 4294901760
    %710 = vmatpush1.msra.mxu0 %v709
    %711 = vmatprep.subr.mxu0 0.0
    %v712 = vand.u32 %v121, 4294901760
    %713 = vmatpush1.msra.mxu0 %v712
    %714 = vmatprep.subr.mxu0 0.0
    %v715 = vand.u32 %v122, 4294901760
    %716 = vmatpush1.msra.mxu0 %v715
    %717 = vmatprep.subr.mxu0 0.0
    %v718 = vand.u32 %v123, 4294901760
    %719 = vmatpush1.msra.mxu0 %v718
    %720 = vmatprep.subr.mxu0 0.0
    %v721 = vand.u32 %v124, 4294901760
    %722 = vmatpush1.msra.mxu0 %v721
    %723 = vmatprep.subr.mxu0 0.0
    %v724 = vand.u32 %v125, 4294901760
    %725 = vmatpush1.msra.mxu0 %v724
    %726 = vmatprep.subr.mxu0 0.0
    %v727 = vand.u32 %v126, 4294901760
    %728 = vmatpush1.msra.mxu0 %v727
    %729 = vmatprep.subr.mxu0 0.0
    %v730 = vand.u32 %v127, 4294901760
    %731 = vmatpush1.msra.mxu0 %v730
    %732 = vmatprep.subr.mxu0 0.0
    %v733 = vand.u32 %v128, 4294901760
    %734 = vmatpush1.msra.mxu0 %v733
    %735 = vmatprep.subr.mxu0 0.0
    %v736 = vand.u32 %v129, 4294901760
    %737 = vmatpush1.msra.mxu0 %v736
    %738 = vmatprep.subr.mxu0 0.0
    %v739 = vand.u32 %v130, 4294901760
    %740 = vmatpush1.msra.mxu0 %v739
    %741 = vmatprep.subr.mxu0 0.0
    %v742 = vand.u32 %v131, 4294901760
    %743 = vmatpush1.msra.mxu0 %v742
    %744 = vmatprep.subr.mxu0 0.0
    %v745 = vand.u32 %v132, 4294901760
    %746 = vmatpush1.msra.mxu0 %v745
    %747 = vmatprep.subr.mxu0 0.0
    %748 = vmatpush1.msra.mxu0 0.0
    %749 = vmatprep.subr.mxu0 0.0
    %750 = vmatpush1.msra.mxu0 0.0
    %751 = vmatprep.subr.mxu0 0.0
    %752 = vmatpush1.msra.mxu0 0.0
    %753 = vmatprep.subr.mxu0 0.0
    %754 = vmatpush1.msra.mxu0 0.0
    %755 = vmatprep.subr.mxu0 0.0
    %756 = vmatpush1.msra.mxu0 0.0
    %757 = vmatprep.subr.mxu0 0.0
    %758 = vmatpush1.msra.mxu0 0.0
    %759 = vmatprep.subr.mxu0 0.0
    %760 = vmatpush1.msra.mxu0 0.0
    %761 = vmatprep.subr.mxu0 0.0
    %762 = vmatpush1.msra.mxu0 0.0
    %763 = vmatprep.subr.mxu0 0.0
    %764 = vmatpush1.msra.mxu0 0.0
    %765 = vmatprep.subr.mxu0 0.0
    %766 = vmatpush1.msra.mxu0 0.0
    %767 = vmatprep.subr.mxu0 0.0
    %768 = vmatpush1.msra.mxu0 0.0
    %769 = vmatprep.subr.mxu0 0.0
    %770 = vmatpush1.msra.mxu0 0.0
    %771 = vmatprep.subr.mxu0 0.0
    %772 = vmatpush1.msra.mxu0 0.0
    %773 = vmatprep.subr.mxu0 0.0
    %774 = vmatpush1.msra.mxu0 0.0
    %775 = vmatprep.subr.mxu0 0.0
    %776 = vmatpush1.msra.mxu0 0.0
    %777 = vmatprep.subr.mxu0 0.0
    %778 = vmatpush1.msra.mxu0 0.0
    %779 = vmatprep.mubr.f32.mxu0 0.0
    %v780 = vand.u32 %v144, 4294901760
    %781 = vmatmul.mubr.f32.gmra.mrb[0].mxu0 %v780
    %v782 = vpop.f32.mrb[0].mxu0
    %v783 = vadd.f32 %v696, %v782
    %v784 = vpop.f32.mrb[0].mxu0
    %785 = vdwg.mxu0
    %v786 = vmax.f32 %v783, 1.2e-38
    %v787 = vlog2.pop %v786
    %v788 = vmul.f32 %v787, 0.6931472
    %v789 = vadd.f32 %v788, %v141
    %v790 = vcvt.s32.f32 %v49
    %vm791 = vcmask 64512
    %v793 = vsel %vm791, %v790, 0
    %795 = vmatprep.subr.mxu0 0.0
    %v796 = vand.u32 %v136, 4294901760
    %797 = vmatpush1.msra.mxu0 %v796
    %798 = vmatprep.subr.mxu0 0.0
    %799 = vmatpush1.msra.mxu0 0.0
    %800 = vmatprep.subr.mxu0 0.0
    %801 = vmatpush1.msra.mxu0 0.0
    %802 = vmatprep.subr.mxu0 0.0
    %803 = vmatpush1.msra.mxu0 0.0
    %804 = vmatprep.subr.mxu0 0.0
    %805 = vmatpush1.msra.mxu0 0.0
    %806 = vmatprep.subr.mxu0 0.0
    %807 = vmatpush1.msra.mxu0 0.0
    %808 = vmatprep.subr.mxu0 0.0
    %809 = vmatpush1.msra.mxu0 0.0
    %810 = vmatprep.subr.mxu0 0.0
    %811 = vmatpush1.msra.mxu0 0.0
    %812 = vmatprep.subr.mxu0 0.0
    %813 = vmatpush1.msra.mxu0 0.0
    %814 = vmatprep.subr.mxu0 0.0
    %815 = vmatpush1.msra.mxu0 0.0
    %816 = vmatprep.subr.mxu0 0.0
    %817 = vmatpush1.msra.mxu0 0.0
    %818 = vmatprep.subr.mxu0 0.0
    %819 = vmatpush1.msra.mxu0 0.0
    %820 = vmatprep.subr.mxu0 0.0
    %821 = vmatpush1.msra.mxu0 0.0
    %822 = vmatprep.subr.mxu0 0.0
    %823 = vmatpush1.msra.mxu0 0.0
    %824 = vmatprep.subr.mxu0 0.0
    %825 = vmatpush1.msra.mxu0 0.0
    %826 = vmatprep.subr.mxu0 0.0
    %827 = vmatpush1.msra.mxu0 0.0
    %828 = vmatprep.subr.mxu0 0.0
    %829 = vmatpush1.msra.mxu0 0.0
    %830 = vmatprep.subr.mxu0 0.0
    %831 = vmatpush1.msra.mxu0 0.0
    %832 = vmatprep.subr.mxu0 0.0
    %833 = vmatpush1.msra.mxu0 0.0
    %834 = vmatprep.subr.mxu0 0.0
    %835 = vmatpush1.msra.mxu0 0.0
    %836 = vmatprep.subr.mxu0 0.0
    %837 = vmatpush1.msra.mxu0 0.0
    %838 = vmatprep.subr.mxu0 0.0
    %839 = vmatpush1.msra.mxu0 0.0
    %840 = vmatprep.subr.mxu0 0.0
    %841 = vmatpush1.msra.mxu0 0.0
    %842 = vmatprep.subr.mxu0 0.0
    %843 = vmatpush1.msra.mxu0 0.0
    %844 = vmatprep.subr.mxu0 0.0
    %845 = vmatpush1.msra.mxu0 0.0
    %846 = vmatprep.subr.mxu0 0.0
    %847 = vmatpush1.msra.mxu0 0.0
    %848 = vmatprep.subr.mxu0 0.0
    %849 = vmatpush1.msra.mxu0 0.0
    %850 = vmatprep.subr.mxu0 0.0
    %851 = vmatpush1.msra.mxu0 0.0
    %852 = vmatprep.subr.mxu0 0.0
    %853 = vmatpush1.msra.mxu0 0.0
    %854 = vmatprep.subr.mxu0 0.0
    %855 = vmatpush1.msra.mxu0 0.0
    %856 = vmatprep.subr.mxu0 0.0
    %857 = vmatpush1.msra.mxu0 0.0
    %858 = vmatprep.subr.mxu0 0.0
    %859 = vmatpush1.msra.mxu0 0.0
    %860 = vmatprep.mubr.f32.mxu0 0.0
    %v861 = vand.u32 %v793, 4294901760
    %v862 = vsub.f32 %v793, %v861
    %v863 = vand.u32 %v862, 4294901760
    %v864 = vsub.f32 %v862, %v863
    %v865 = vand.u32 %v864, 4294901760
    %866 = vmatmul.mubr.f32.gmra.mrb[0].mxu0 %v865
    %v867 = vpop.f32.mrb[0].mxu0
    %v868 = vadd.f32 0.0, %v867
    %v869 = vpop.f32.mrb[0].mxu0
    %870 = vdwg.mxu0
    %871 = vmatprep.subr.mxu0 0.0
    %v872 = vand.u32 %v136, 4294901760
    %v873 = vsub.f32 %v136, %v872
    %v874 = vand.u32 %v873, 4294901760
    %v875 = vsub.f32 %v873, %v874
    %v876 = vand.u32 %v875, 4294901760
    %877 = vmatpush1.msra.mxu0 %v876
    %878 = vmatprep.subr.mxu0 0.0
    %879 = vmatpush1.msra.mxu0 0.0
    %880 = vmatprep.subr.mxu0 0.0
    %881 = vmatpush1.msra.mxu0 0.0
    %882 = vmatprep.subr.mxu0 0.0
    %883 = vmatpush1.msra.mxu0 0.0
    %884 = vmatprep.subr.mxu0 0.0
    %885 = vmatpush1.msra.mxu0 0.0
    %886 = vmatprep.subr.mxu0 0.0
    %887 = vmatpush1.msra.mxu0 0.0
    %888 = vmatprep.subr.mxu0 0.0
    %889 = vmatpush1.msra.mxu0 0.0
    %890 = vmatprep.subr.mxu0 0.0
    %891 = vmatpush1.msra.mxu0 0.0
    %892 = vmatprep.subr.mxu0 0.0
    %893 = vmatpush1.msra.mxu0 0.0
    %894 = vmatprep.subr.mxu0 0.0
    %895 = vmatpush1.msra.mxu0 0.0
    %896 = vmatprep.subr.mxu0 0.0
    %897 = vmatpush1.msra.mxu0 0.0
    %898 = vmatprep.subr.mxu0 0.0
    %899 = vmatpush1.msra.mxu0 0.0
    %900 = vmatprep.subr.mxu0 0.0
    %901 = vmatpush1.msra.mxu0 0.0
    %902 = vmatprep.subr.mxu0 0.0
    %903 = vmatpush1.msra.mxu0 0.0
    %904 = vmatprep.subr.mxu0 0.0
    %905 = vmatpush1.msra.mxu0 0.0
    %906 = vmatprep.subr.mxu0 0.0
    %907 = vmatpush1.msra.mxu0 0.0
    %908 = vmatprep.subr.mxu0 0.0
    %909 = vmatpush1.msra.mxu0 0.0
    %910 = vmatprep.subr.mxu0 0.0
    %911 = vmatpush1.msra.mxu0 0.0
    %912 = vmatprep.subr.mxu0 0.0
    %913 = vmatpush1.msra.mxu0 0.0
    %914 = vmatprep.subr.mxu0 0.0
    %915 = vmatpush1.msra.mxu0 0.0
    %916 = vmatprep.subr.mxu0 0.0
    %917 = vmatpush1.msra.mxu0 0.0
    %918 = vmatprep.subr.mxu0 0.0
    %919 = vmatpush1.msra.mxu0 0.0
    %920 = vmatprep.subr.mxu0 0.0
    %921 = vmatpush1.msra.mxu0 0.0
    %922 = vmatprep.subr.mxu0 0.0
    %923 = vmatpush1.msra.mxu0 0.0
    %924 = vmatprep.subr.mxu0 0.0
    %925 = vmatpush1.msra.mxu0 0.0
    %926 = vmatprep.subr.mxu0 0.0
    %927 = vmatpush1.msra.mxu0 0.0
    %928 = vmatprep.subr.mxu0 0.0
    %929 = vmatpush1.msra.mxu0 0.0
    %930 = vmatprep.subr.mxu0 0.0
    %931 = vmatpush1.msra.mxu0 0.0
    %932 = vmatprep.subr.mxu0 0.0
    %933 = vmatpush1.msra.mxu0 0.0
    %934 = vmatprep.subr.mxu0 0.0
    %935 = vmatpush1.msra.mxu0 0.0
    %936 = vmatprep.subr.mxu0 0.0
    %937 = vmatpush1.msra.mxu0 0.0
    %938 = vmatprep.subr.mxu0 0.0
    %939 = vmatpush1.msra.mxu0 0.0
    %940 = vmatprep.mubr.f32.mxu0 0.0
    %v941 = vand.u32 %v793, 4294901760
    %942 = vmatmul.mubr.f32.gmra.mrb[0].mxu0 %v941
    %v943 = vpop.f32.mrb[0].mxu0
    %v944 = vadd.f32 %v868, %v943
    %v945 = vpop.f32.mrb[0].mxu0
    %946 = vdwg.mxu0
    %947 = vmatprep.subr.mxu0 0.0
    %v948 = vand.u32 %v136, 4294901760
    %v949 = vsub.f32 %v136, %v948
    %950 = vmatpush1.msra.mxu0 %v949
    %951 = vmatprep.subr.mxu0 0.0
    %952 = vmatpush1.msra.mxu0 0.0
    %953 = vmatprep.subr.mxu0 0.0
    %954 = vmatpush1.msra.mxu0 0.0
    %955 = vmatprep.subr.mxu0 0.0
    %956 = vmatpush1.msra.mxu0 0.0
    %957 = vmatprep.subr.mxu0 0.0
    %958 = vmatpush1.msra.mxu0 0.0
    %959 = vmatprep.subr.mxu0 0.0
    %960 = vmatpush1.msra.mxu0 0.0
    %961 = vmatprep.subr.mxu0 0.0
    %962 = vmatpush1.msra.mxu0 0.0
    %963 = vmatprep.subr.mxu0 0.0
    %964 = vmatpush1.msra.mxu0 0.0
    %965 = vmatprep.subr.mxu0 0.0
    %966 = vmatpush1.msra.mxu0 0.0
    %967 = vmatprep.subr.mxu0 0.0
    %968 = vmatpush1.msra.mxu0 0.0
    %969 = vmatprep.subr.mxu0 0.0
    %970 = vmatpush1.msra.mxu0 0.0
    %971 = vmatprep.subr.mxu0 0.0
    %972 = vmatpush1.msra.mxu0 0.0
    %973 = vmatprep.subr.mxu0 0.0
    %974 = vmatpush1.msra.mxu0 0.0
    %975 = vmatprep.subr.mxu0 0.0
    %976 = vmatpush1.msra.mxu0 0.0
    %977 = vmatprep.subr.mxu0 0.0
    %978 = vmatpush1.msra.mxu0 0.0
    %979 = vmatprep.subr.mxu0 0.0
    %980 = vmatpush1.msra.mxu0 0.0
    %981 = vmatprep.subr.mxu0 0.0
    %982 = vmatpush1.msra.mxu0 0.0
    %983 = vmatprep.subr.mxu0 0.0
    %984 = vmatpush1.msra.mxu0 0.0
    %985 = vmatprep.subr.mxu0 0.0
    %986 = vmatpush1.msra.mxu0 0.0
    %987 = vmatprep.subr.mxu0 0.0
    %988 = vmatpush1.msra.mxu0 0.0
    %989 = vmatprep.subr.mxu0 0.0
    %990 = vmatpush1.msra.mxu0 0.0
    %991 = vmatprep.subr.mxu0 0.0
    %992 = vmatpush1.msra.mxu0 0.0
    %993 = vmatprep.subr.mxu0 0.0
    %994 = vmatpush1.msra.mxu0 0.0
    %995 = vmatprep.subr.mxu0 0.0
    %996 = vmatpush1.msra.mxu0 0.0
    %997 = vmatprep.subr.mxu0 0.0
    %998 = vmatpush1.msra.mxu0 0.0
    %999 = vmatprep.subr.mxu0 0.0
    %1000 = vmatpush1.msra.mxu0 0.0
    %1001 = vmatprep.subr.mxu0 0.0
    %1002 = vmatpush1.msra.mxu0 0.0
    %1003 = vmatprep.subr.mxu0 0.0
    %1004 = vmatpush1.msra.mxu0 0.0
    %1005 = vmatprep.subr.mxu0 0.0
    %1006 = vmatpush1.msra.mxu0 0.0
    %1007 = vmatprep.subr.mxu0 0.0
    %1008 = vmatpush1.msra.mxu0 0.0
    %1009 = vmatprep.subr.mxu0 0.0
    %1010 = vmatpush1.msra.mxu0 0.0
    %1011 = vmatprep.subr.mxu0 0.0
    %1012 = vmatpush1.msra.mxu0 0.0
    %1013 = vmatprep.mubr.f32.mxu0 0.0
    %v1014 = vand.u32 %v793, 4294901760
    %v1015 = vsub.f32 %v793, %v1014
    %1016 = vmatmul.mubr.f32.gmra.mrb[0].mxu0 %v1015
    %v1017 = vpop.f32.mrb[0].mxu0
    %v1018 = vadd.f32 %v944, %v1017
    %v1019 = vpop.f32.mrb[0].mxu0
    %1020 = vdwg.mxu0
    %1021 = vmatprep.subr.mxu0 0.0
    %v1022 = vand.u32 %v136, 4294901760
    %1023 = vmatpush1.msra.mxu0 %v1022
    %1024 = vmatprep.subr.mxu0 0.0
    %1025 = vmatpush1.msra.mxu0 0.0
    %1026 = vmatprep.subr.mxu0 0.0
    %1027 = vmatpush1.msra.mxu0 0.0
    %1028 = vmatprep.subr.mxu0 0.0
    %1029 = vmatpush1.msra.mxu0 0.0
    %1030 = vmatprep.subr.mxu0 0.0
    %1031 = vmatpush1.msra.mxu0 0.0
    %1032 = vmatprep.subr.mxu0 0.0
    %1033 = vmatpush1.msra.mxu0 0.0
    %1034 = vmatprep.subr.mxu0 0.0
    %1035 = vmatpush1.msra.mxu0 0.0
    %1036 = vmatprep.subr.mxu0 0.0
    %1037 = vmatpush1.msra.mxu0 0.0
    %1038 = vmatprep.subr.mxu0 0.0
    %1039 = vmatpush1.msra.mxu0 0.0
    %1040 = vmatprep.subr.mxu0 0.0
    %1041 = vmatpush1.msra.mxu0 0.0
    %1042 = vmatprep.subr.mxu0 0.0
    %1043 = vmatpush1.msra.mxu0 0.0
    %1044 = vmatprep.subr.mxu0 0.0
    %1045 = vmatpush1.msra.mxu0 0.0
    %1046 = vmatprep.subr.mxu0 0.0
    %1047 = vmatpush1.msra.mxu0 0.0
    %1048 = vmatprep.subr.mxu0 0.0
    %1049 = vmatpush1.msra.mxu0 0.0
    %1050 = vmatprep.subr.mxu0 0.0
    %1051 = vmatpush1.msra.mxu0 0.0
    %1052 = vmatprep.subr.mxu0 0.0
    %1053 = vmatpush1.msra.mxu0 0.0
    %1054 = vmatprep.subr.mxu0 0.0
    %1055 = vmatpush1.msra.mxu0 0.0
    %1056 = vmatprep.subr.mxu0 0.0
    %1057 = vmatpush1.msra.mxu0 0.0
    %1058 = vmatprep.subr.mxu0 0.0
    %1059 = vmatpush1.msra.mxu0 0.0
    %1060 = vmatprep.subr.mxu0 0.0
    %1061 = vmatpush1.msra.mxu0 0.0
    %1062 = vmatprep.subr.mxu0 0.0
    %1063 = vmatpush1.msra.mxu0 0.0
    %1064 = vmatprep.subr.mxu0 0.0
    %1065 = vmatpush1.msra.mxu0 0.0
    %1066 = vmatprep.subr.mxu0 0.0
    %1067 = vmatpush1.msra.mxu0 0.0
    %1068 = vmatprep.subr.mxu0 0.0
    %1069 = vmatpush1.msra.mxu0 0.0
    %1070 = vmatprep.subr.mxu0 0.0
    %1071 = vmatpush1.msra.mxu0 0.0
    %1072 = vmatprep.subr.mxu0 0.0
    %1073 = vmatpush1.msra.mxu0 0.0
    %1074 = vmatprep.subr.mxu0 0.0
    %1075 = vmatpush1.msra.mxu0 0.0
    %1076 = vmatprep.subr.mxu0 0.0
    %1077 = vmatpush1.msra.mxu0 0.0
    %1078 = vmatprep.subr.mxu0 0.0
    %1079 = vmatpush1.msra.mxu0 0.0
    %1080 = vmatprep.subr.mxu0 0.0
    %1081 = vmatpush1.msra.mxu0 0.0
    %1082 = vmatprep.subr.mxu0 0.0
    %1083 = vmatpush1.msra.mxu0 0.0
    %1084 = vmatprep.subr.mxu0 0.0
    %1085 = vmatpush1.msra.mxu0 0.0
    %1086 = vmatprep.mubr.f32.mxu0 0.0
    %v1087 = vand.u32 %v793, 4294901760
    %v1088 = vsub.f32 %v793, %v1087
    %v1089 = vand.u32 %v1088, 4294901760
    %1090 = vmatmul.mubr.f32.gmra.mrb[0].mxu0 %v1089
    %v1091 = vpop.f32.mrb[0].mxu0
    %v1092 = vadd.f32 %v1018, %v1091
    %v1093 = vpop.f32.mrb[0].mxu0
    %1094 = vdwg.mxu0
    %1095 = vmatprep.subr.mxu0 0.0
    %v1096 = vand.u32 %v136, 4294901760
    %v1097 = vsub.f32 %v136, %v1096
    %v1098 = vand.u32 %v1097, 4294901760
    %1099 = vmatpush1.msra.mxu0 %v1098
    %1100 = vmatprep.subr.mxu0 0.0
    %1101 = vmatpush1.msra.mxu0 0.0
    %1102 = vmatprep.subr.mxu0 0.0
    %1103 = vmatpush1.msra.mxu0 0.0
    %1104 = vmatprep.subr.mxu0 0.0
    %1105 = vmatpush1.msra.mxu0 0.0
    %1106 = vmatprep.subr.mxu0 0.0
    %1107 = vmatpush1.msra.mxu0 0.0
    %1108 = vmatprep.subr.mxu0 0.0
    %1109 = vmatpush1.msra.mxu0 0.0
    %1110 = vmatprep.subr.mxu0 0.0
    %1111 = vmatpush1.msra.mxu0 0.0
    %1112 = vmatprep.subr.mxu0 0.0
    %1113 = vmatpush1.msra.mxu0 0.0
    %1114 = vmatprep.subr.mxu0 0.0
    %1115 = vmatpush1.msra.mxu0 0.0
    %1116 = vmatprep.subr.mxu0 0.0
    %1117 = vmatpush1.msra.mxu0 0.0
    %1118 = vmatprep.subr.mxu0 0.0
    %1119 = vmatpush1.msra.mxu0 0.0
    %1120 = vmatprep.subr.mxu0 0.0
    %1121 = vmatpush1.msra.mxu0 0.0
    %1122 = vmatprep.subr.mxu0 0.0
    %1123 = vmatpush1.msra.mxu0 0.0
    %1124 = vmatprep.subr.mxu0 0.0
    %1125 = vmatpush1.msra.mxu0 0.0
    %1126 = vmatprep.subr.mxu0 0.0
    %1127 = vmatpush1.msra.mxu0 0.0
    %1128 = vmatprep.subr.mxu0 0.0
    %1129 = vmatpush1.msra.mxu0 0.0
    %1130 = vmatprep.subr.mxu0 0.0
    %1131 = vmatpush1.msra.mxu0 0.0
    %1132 = vmatprep.subr.mxu0 0.0
    %1133 = vmatpush1.msra.mxu0 0.0
    %1134 = vmatprep.subr.mxu0 0.0
    %1135 = vmatpush1.msra.mxu0 0.0
    %1136 = vmatprep.subr.mxu0 0.0
    %1137 = vmatpush1.msra.mxu0 0.0
    %1138 = vmatprep.subr.mxu0 0.0
    %1139 = vmatpush1.msra.mxu0 0.0
    %1140 = vmatprep.subr.mxu0 0.0
    %1141 = vmatpush1.msra.mxu0 0.0
    %1142 = vmatprep.subr.mxu0 0.0
    %1143 = vmatpush1.msra.mxu0 0.0
    %1144 = vmatprep.subr.mxu0 0.0
    %1145 = vmatpush1.msra.mxu0 0.0
    %1146 = vmatprep.subr.mxu0 0.0
    %1147 = vmatpush1.msra.mxu0 0.0
    %1148 = vmatprep.subr.mxu0 0.0
    %1149 = vmatpush1.msra.mxu0 0.0
    %1150 = vmatprep.subr.mxu0 0.0
    %1151 = vmatpush1.msra.mxu0 0.0
    %1152 = vmatprep.subr.mxu0 0.0
    %1153 = vmatpush1.msra.mxu0 0.0
    %1154 = vmatprep.subr.mxu0 0.0
    %1155 = vmatpush1.msra.mxu0 0.0
    %1156 = vmatprep.subr.mxu0 0.0
    %1157 = vmatpush1.msra.mxu0 0.0
    %1158 = vmatprep.subr.mxu0 0.0
    %1159 = vmatpush1.msra.mxu0 0.0
    %1160 = vmatprep.subr.mxu0 0.0
    %1161 = vmatpush1.msra.mxu0 0.0
    %1162 = vmatprep.mubr.f32.mxu0 0.0
    %v1163 = vand.u32 %v793, 4294901760
    %1164 = vmatmul.mubr.f32.gmra.mrb[0].mxu0 %v1163
    %v1165 = vpop.f32.mrb[0].mxu0
    %v1166 = vadd.f32 %v1092, %v1165
    %v1167 = vpop.f32.mrb[0].mxu0
    %1168 = vdwg.mxu0
    %1169 = vmatprep.subr.mxu0 0.0
    %v1170 = vand.u32 %v136, 4294901760
    %1171 = vmatpush1.msra.mxu0 %v1170
    %1172 = vmatprep.subr.mxu0 0.0
    %1173 = vmatpush1.msra.mxu0 0.0
    %1174 = vmatprep.subr.mxu0 0.0
    %1175 = vmatpush1.msra.mxu0 0.0
    %1176 = vmatprep.subr.mxu0 0.0
    %1177 = vmatpush1.msra.mxu0 0.0
    %1178 = vmatprep.subr.mxu0 0.0
    %1179 = vmatpush1.msra.mxu0 0.0
    %1180 = vmatprep.subr.mxu0 0.0
    %1181 = vmatpush1.msra.mxu0 0.0
    %1182 = vmatprep.subr.mxu0 0.0
    %1183 = vmatpush1.msra.mxu0 0.0
    %1184 = vmatprep.subr.mxu0 0.0
    %1185 = vmatpush1.msra.mxu0 0.0
    %1186 = vmatprep.subr.mxu0 0.0
    %1187 = vmatpush1.msra.mxu0 0.0
    %1188 = vmatprep.subr.mxu0 0.0
    %1189 = vmatpush1.msra.mxu0 0.0
    %1190 = vmatprep.subr.mxu0 0.0
    %1191 = vmatpush1.msra.mxu0 0.0
    %1192 = vmatprep.subr.mxu0 0.0
    %1193 = vmatpush1.msra.mxu0 0.0
    %1194 = vmatprep.subr.mxu0 0.0
    %1195 = vmatpush1.msra.mxu0 0.0
    %1196 = vmatprep.subr.mxu0 0.0
    %1197 = vmatpush1.msra.mxu0 0.0
    %1198 = vmatprep.subr.mxu0 0.0
    %1199 = vmatpush1.msra.mxu0 0.0
    %1200 = vmatprep.subr.mxu0 0.0
    %1201 = vmatpush1.msra.mxu0 0.0
    %1202 = vmatprep.subr.mxu0 0.0
    %1203 = vmatpush1.msra.mxu0 0.0
    %1204 = vmatprep.subr.mxu0 0.0
    %1205 = vmatpush1.msra.mxu0 0.0
    %1206 = vmatprep.subr.mxu0 0.0
    %1207 = vmatpush1.msra.mxu0 0.0
    %1208 = vmatprep.subr.mxu0 0.0
    %1209 = vmatpush1.msra.mxu0 0.0
    %1210 = vmatprep.subr.mxu0 0.0
    %1211 = vmatpush1.msra.mxu0 0.0
    %1212 = vmatprep.subr.mxu0 0.0
    %1213 = vmatpush1.msra.mxu0 0.0
    %1214 = vmatprep.subr.mxu0 0.0
    %1215 = vmatpush1.msra.mxu0 0.0
    %1216 = vmatprep.subr.mxu0 0.0
    %1217 = vmatpush1.msra.mxu0 0.0
    %1218 = vmatprep.subr.mxu0 0.0
    %1219 = vmatpush1.msra.mxu0 0.0
    %1220 = vmatprep.subr.mxu0 0.0
    %1221 = vmatpush1.msra.mxu0 0.0
    %1222 = vmatprep.subr.mxu0 0.0
    %1223 = vmatpush1.msra.mxu0 0.0
    %1224 = vmatprep.subr.mxu0 0.0
    %1225 = vmatpush1.msra.mxu0 0.0
    %1226 = vmatprep.subr.mxu0 0.0
    %1227 = vmatpush1.msra.mxu0 0.0
    %1228 = vmatprep.subr.mxu0 0.0
    %1229 = vmatpush1.msra.mxu0 0.0
    %1230 = vmatprep.subr.mxu0 0.0
    %1231 = vmatpush1.msra.mxu0 0.0
    %1232 = vmatprep.subr.mxu0 0.0
    %1233 = vmatpush1.msra.mxu0 0.0
    %1234 = vmatprep.mubr.f32.mxu0 0.0
    %v1235 = vand.u32 %v793, 4294901760
    %1236 = vmatmul.mubr.f32.gmra.mrb[0].mxu0 %v1235
    %v1237 = vpop.f32.mrb[0].mxu0
    %v1238 = vadd.f32 %v1166, %v1237
    %v1239 = vpop.f32.mrb[0].mxu0
    %1240 = vdwg.mxu0
    %v1241 = vcvt.s32.f32 %v137
    %vm1242 = vcmp.eq.f32.partialorder %v1241, %v1238
    %v1243 = vsel %vm1242, %v48, 0.0
    %1244 = vmatprep.subr.mxu0 0.0
    %v1245 = vand.u32 %v117, 4294901760
    %1246 = vmatpush1.msra.mxu0 %v1245
    %1247 = vmatprep.subr.mxu0 0.0
    %v1248 = vand.u32 %v118, 4294901760
    %1249 = vmatpush1.msra.mxu0 %v1248
    %1250 = vmatprep.subr.mxu0 0.0
    %v1251 = vand.u32 %v119, 4294901760
    %1252 = vmatpush1.msra.mxu0 %v1251
    %1253 = vmatprep.subr.mxu0 0.0
    %v1254 = vand.u32 %v120, 4294901760
    %1255 = vmatpush1.msra.mxu0 %v1254
    %1256 = vmatprep.subr.mxu0 0.0
    %v1257 = vand.u32 %v121, 4294901760
    %1258 = vmatpush1.msra.mxu0 %v1257
    %1259 = vmatprep.subr.mxu0 0.0
    %v1260 = vand.u32 %v122, 4294901760
    %1261 = vmatpush1.msra.mxu0 %v1260
    %1262 = vmatprep.subr.mxu0 0.0
    %v1263 = vand.u32 %v123, 4294901760
    %1264 = vmatpush1.msra.mxu0 %v1263
    %1265 = vmatprep.subr.mxu0 0.0
    %v1266 = vand.u32 %v124, 4294901760
    %1267 = vmatpush1.msra.mxu0 %v1266
    %1268 = vmatprep.subr.mxu0 0.0
    %v1269 = vand.u32 %v125, 4294901760
    %1270 = vmatpush1.msra.mxu0 %v1269
    %1271 = vmatprep.subr.mxu0 0.0
    %v1272 = vand.u32 %v126, 4294901760
    %1273 = vmatpush1.msra.mxu0 %v1272
    %1274 = vmatprep.subr.mxu0 0.0
    %v1275 = vand.u32 %v127, 4294901760
    %1276 = vmatpush1.msra.mxu0 %v1275
    %1277 = vmatprep.subr.mxu0 0.0
    %v1278 = vand.u32 %v128, 4294901760
    %1279 = vmatpush1.msra.mxu0 %v1278
    %1280 = vmatprep.subr.mxu0 0.0
    %v1281 = vand.u32 %v129, 4294901760
    %1282 = vmatpush1.msra.mxu0 %v1281
    %1283 = vmatprep.subr.mxu0 0.0
    %v1284 = vand.u32 %v130, 4294901760
    %1285 = vmatpush1.msra.mxu0 %v1284
    %1286 = vmatprep.subr.mxu0 0.0
    %v1287 = vand.u32 %v131, 4294901760
    %1288 = vmatpush1.msra.mxu0 %v1287
    %1289 = vmatprep.subr.mxu0 0.0
    %v1290 = vand.u32 %v132, 4294901760
    %1291 = vmatpush1.msra.mxu0 %v1290
    %1292 = vmatprep.subr.mxu0 0.0
    %1293 = vmatpush1.msra.mxu0 0.0
    %1294 = vmatprep.subr.mxu0 0.0
    %1295 = vmatpush1.msra.mxu0 0.0
    %1296 = vmatprep.subr.mxu0 0.0
    %1297 = vmatpush1.msra.mxu0 0.0
    %1298 = vmatprep.subr.mxu0 0.0
    %1299 = vmatpush1.msra.mxu0 0.0
    %1300 = vmatprep.subr.mxu0 0.0
    %1301 = vmatpush1.msra.mxu0 0.0
    %1302 = vmatprep.subr.mxu0 0.0
    %1303 = vmatpush1.msra.mxu0 0.0
    %1304 = vmatprep.subr.mxu0 0.0
    %1305 = vmatpush1.msra.mxu0 0.0
    %1306 = vmatprep.subr.mxu0 0.0
    %1307 = vmatpush1.msra.mxu0 0.0
    %1308 = vmatprep.subr.mxu0 0.0
    %1309 = vmatpush1.msra.mxu0 0.0
    %1310 = vmatprep.subr.mxu0 0.0
    %1311 = vmatpush1.msra.mxu0 0.0
    %1312 = vmatprep.subr.mxu0 0.0
    %1313 = vmatpush1.msra.mxu0 0.0
    %1314 = vmatprep.subr.mxu0 0.0
    %1315 = vmatpush1.msra.mxu0 0.0
    %1316 = vmatprep.subr.mxu0 0.0
    %1317 = vmatpush1.msra.mxu0 0.0
    %1318 = vmatprep.subr.mxu0 0.0
    %1319 = vmatpush1.msra.mxu0 0.0
    %1320 = vmatprep.subr.mxu0 0.0
    %1321 = vmatpush1.msra.mxu0 0.0
    %1322 = vmatprep.subr.mxu0 0.0
    %1323 = vmatpush1.msra.mxu0 0.0
    %1324 = vmatprep.mubr.f32.mxu0 0.0
    %v1325 = vand.u32 %v1243, 4294901760
    %v1326 = vsub.f32 %v1243, %v1325
    %v1327 = vand.u32 %v1326, 4294901760
    %v1328 = vsub.f32 %v1326, %v1327
    %v1329 = vand.u32 %v1328, 4294901760
    %1330 = vmatmul.mubr.f32.gmra.mrb[0].mxu0 %v1329
    %v1331 = vpop.f32.mrb[0].mxu0
    %v1332 = vadd.f32 0.0, %v1331
    %v1333 = vpop.f32.mrb[0].mxu0
    %1334 = vdwg.mxu0
    %1335 = vmatprep.subr.mxu0 0.0
    %v1336 = vand.u32 %v117, 4294901760
    %v1337 = vsub.f32 %v117, %v1336
    %v1338 = vand.u32 %v1337, 4294901760
    %v1339 = vsub.f32 %v1337, %v1338
    %v1340 = vand.u32 %v1339, 4294901760
    %1341 = vmatpush1.msra.mxu0 %v1340
    %1342 = vmatprep.subr.mxu0 0.0
    %v1343 = vand.u32 %v118, 4294901760
    %v1344 = vsub.f32 %v118, %v1343
    %v1345 = vand.u32 %v1344, 4294901760
    %v1346 = vsub.f32 %v1344, %v1345
    %v1347 = vand.u32 %v1346, 4294901760
    %1348 = vmatpush1.msra.mxu0 %v1347
    %1349 = vmatprep.subr.mxu0 0.0
    %v1350 = vand.u32 %v119, 4294901760
    %v1351 = vsub.f32 %v119, %v1350
    %v1352 = vand.u32 %v1351, 4294901760
    %v1353 = vsub.f32 %v1351, %v1352
    %v1354 = vand.u32 %v1353, 4294901760
    %1355 = vmatpush1.msra.mxu0 %v1354
    %1356 = vmatprep.subr.mxu0 0.0
    %v1357 = vand.u32 %v120, 4294901760
    %v1358 = vsub.f32 %v120, %v1357
    %v1359 = vand.u32 %v1358, 4294901760
    %v1360 = vsub.f32 %v1358, %v1359
    %v1361 = vand.u32 %v1360, 4294901760
    %1362 = vmatpush1.msra.mxu0 %v1361
    %1363 = vmatprep.subr.mxu0 0.0
    %v1364 = vand.u32 %v121, 4294901760
    %v1365 = vsub.f32 %v121, %v1364
    %v1366 = vand.u32 %v1365, 4294901760
    %v1367 = vsub.f32 %v1365, %v1366
    %v1368 = vand.u32 %v1367, 4294901760
    %1369 = vmatpush1.msra.mxu0 %v1368
    %1370 = vmatprep.subr.mxu0 0.0
    %v1371 = vand.u32 %v122, 4294901760
    %v1372 = vsub.f32 %v122, %v1371
    %v1373 = vand.u32 %v1372, 4294901760
    %v1374 = vsub.f32 %v1372, %v1373
    %v1375 = vand.u32 %v1374, 4294901760
    %1376 = vmatpush1.msra.mxu0 %v1375
    %1377 = vmatprep.subr.mxu0 0.0
    %v1378 = vand.u32 %v123, 4294901760
    %v1379 = vsub.f32 %v123, %v1378
    %v1380 = vand.u32 %v1379, 4294901760
    %v1381 = vsub.f32 %v1379, %v1380
    %v1382 = vand.u32 %v1381, 4294901760
    %1383 = vmatpush1.msra.mxu0 %v1382
    %1384 = vmatprep.subr.mxu0 0.0
    %v1385 = vand.u32 %v124, 4294901760
    %v1386 = vsub.f32 %v124, %v1385
    %v1387 = vand.u32 %v1386, 4294901760
    %v1388 = vsub.f32 %v1386, %v1387
    %v1389 = vand.u32 %v1388, 4294901760
    %1390 = vmatpush1.msra.mxu0 %v1389
    %1391 = vmatprep.subr.mxu0 0.0
    %v1392 = vand.u32 %v125, 4294901760
    %v1393 = vsub.f32 %v125, %v1392
    %v1394 = vand.u32 %v1393, 4294901760
    %v1395 = vsub.f32 %v1393, %v1394
    %v1396 = vand.u32 %v1395, 4294901760
    %1397 = vmatpush1.msra.mxu0 %v1396
    %1398 = vmatprep.subr.mxu0 0.0
    %v1399 = vand.u32 %v126, 4294901760
    %v1400 = vsub.f32 %v126, %v1399
    %v1401 = vand.u32 %v1400, 4294901760
    %v1402 = vsub.f32 %v1400, %v1401
    %v1403 = vand.u32 %v1402, 4294901760
    %1404 = vmatpush1.msra.mxu0 %v1403
    %1405 = vmatprep.subr.mxu0 0.0
    %v1406 = vand.u32 %v127, 4294901760
    %v1407 = vsub.f32 %v127, %v1406
    %v1408 = vand.u32 %v1407, 4294901760
    %v1409 = vsub.f32 %v1407, %v1408
    %v1410 = vand.u32 %v1409, 4294901760
    %1411 = vmatpush1.msra.mxu0 %v1410
    %1412 = vmatprep.subr.mxu0 0.0
    %v1413 = vand.u32 %v128, 4294901760
    %v1414 = vsub.f32 %v128, %v1413
    %v1415 = vand.u32 %v1414, 4294901760
    %v1416 = vsub.f32 %v1414, %v1415
    %v1417 = vand.u32 %v1416, 4294901760
    %1418 = vmatpush1.msra.mxu0 %v1417
    %1419 = vmatprep.subr.mxu0 0.0
    %v1420 = vand.u32 %v129, 4294901760
    %v1421 = vsub.f32 %v129, %v1420
    %v1422 = vand.u32 %v1421, 4294901760
    %v1423 = vsub.f32 %v1421, %v1422
    %v1424 = vand.u32 %v1423, 4294901760
    %1425 = vmatpush1.msra.mxu0 %v1424
    %1426 = vmatprep.subr.mxu0 0.0
    %v1427 = vand.u32 %v130, 4294901760
    %v1428 = vsub.f32 %v130, %v1427
    %v1429 = vand.u32 %v1428, 4294901760
    %v1430 = vsub.f32 %v1428, %v1429
    %v1431 = vand.u32 %v1430, 4294901760
    %1432 = vmatpush1.msra.mxu0 %v1431
    %1433 = vmatprep.subr.mxu0 0.0
    %v1434 = vand.u32 %v131, 4294901760
    %v1435 = vsub.f32 %v131, %v1434
    %v1436 = vand.u32 %v1435, 4294901760
    %v1437 = vsub.f32 %v1435, %v1436
    %v1438 = vand.u32 %v1437, 4294901760
    %1439 = vmatpush1.msra.mxu0 %v1438
    %1440 = vmatprep.subr.mxu0 0.0
    %v1441 = vand.u32 %v132, 4294901760
    %v1442 = vsub.f32 %v132, %v1441
    %v1443 = vand.u32 %v1442, 4294901760
    %v1444 = vsub.f32 %v1442, %v1443
    %v1445 = vand.u32 %v1444, 4294901760
    %1446 = vmatpush1.msra.mxu0 %v1445
    %1447 = vmatprep.subr.mxu0 0.0
    %1448 = vmatpush1.msra.mxu0 0.0
    %1449 = vmatprep.subr.mxu0 0.0
    %1450 = vmatpush1.msra.mxu0 0.0
    %1451 = vmatprep.subr.mxu0 0.0
    %1452 = vmatpush1.msra.mxu0 0.0
    %1453 = vmatprep.subr.mxu0 0.0
    %1454 = vmatpush1.msra.mxu0 0.0
    %1455 = vmatprep.subr.mxu0 0.0
    %1456 = vmatpush1.msra.mxu0 0.0
    %1457 = vmatprep.subr.mxu0 0.0
    %1458 = vmatpush1.msra.mxu0 0.0
    %1459 = vmatprep.subr.mxu0 0.0
    %1460 = vmatpush1.msra.mxu0 0.0
    %1461 = vmatprep.subr.mxu0 0.0
    %1462 = vmatpush1.msra.mxu0 0.0
    %1463 = vmatprep.subr.mxu0 0.0
    %1464 = vmatpush1.msra.mxu0 0.0
    %1465 = vmatprep.subr.mxu0 0.0
    %1466 = vmatpush1.msra.mxu0 0.0
    %1467 = vmatprep.subr.mxu0 0.0
    %1468 = vmatpush1.msra.mxu0 0.0
    %1469 = vmatprep.subr.mxu0 0.0
    %1470 = vmatpush1.msra.mxu0 0.0
    %1471 = vmatprep.subr.mxu0 0.0
    %1472 = vmatpush1.msra.mxu0 0.0
    %1473 = vmatprep.subr.mxu0 0.0
    %1474 = vmatpush1.msra.mxu0 0.0
    %1475 = vmatprep.subr.mxu0 0.0
    %1476 = vmatpush1.msra.mxu0 0.0
    %1477 = vmatprep.subr.mxu0 0.0
    %1478 = vmatpush1.msra.mxu0 0.0
    %1479 = vmatprep.mubr.f32.mxu0 0.0
    %v1480 = vand.u32 %v1243, 4294901760
    %1481 = vmatmul.mubr.f32.gmra.mrb[0].mxu0 %v1480
    %v1482 = vpop.f32.mrb[0].mxu0
    %v1483 = vadd.f32 %v1332, %v1482
    %v1484 = vpop.f32.mrb[0].mxu0
    %1485 = vdwg.mxu0
    %1486 = vmatprep.subr.mxu0 0.0
    %v1487 = vand.u32 %v117, 4294901760
    %v1488 = vsub.f32 %v117, %v1487
    %1489 = vmatpush1.msra.mxu0 %v1488
    %1490 = vmatprep.subr.mxu0 0.0
    %v1491 = vand.u32 %v118, 4294901760
    %v1492 = vsub.f32 %v118, %v1491
    %1493 = vmatpush1.msra.mxu0 %v1492
    %1494 = vmatprep.subr.mxu0 0.0
    %v1495 = vand.u32 %v119, 4294901760
    %v1496 = vsub.f32 %v119, %v1495
    %1497 = vmatpush1.msra.mxu0 %v1496
    %1498 = vmatprep.subr.mxu0 0.0
    %v1499 = vand.u32 %v120, 4294901760
    %v1500 = vsub.f32 %v120, %v1499
    %1501 = vmatpush1.msra.mxu0 %v1500
    %1502 = vmatprep.subr.mxu0 0.0
    %v1503 = vand.u32 %v121, 4294901760
    %v1504 = vsub.f32 %v121, %v1503
    %1505 = vmatpush1.msra.mxu0 %v1504
    %1506 = vmatprep.subr.mxu0 0.0
    %v1507 = vand.u32 %v122, 4294901760
    %v1508 = vsub.f32 %v122, %v1507
    %1509 = vmatpush1.msra.mxu0 %v1508
    %1510 = vmatprep.subr.mxu0 0.0
    %v1511 = vand.u32 %v123, 4294901760
    %v1512 = vsub.f32 %v123, %v1511
    %1513 = vmatpush1.msra.mxu0 %v1512
    %1514 = vmatprep.subr.mxu0 0.0
    %v1515 = vand.u32 %v124, 4294901760
    %v1516 = vsub.f32 %v124, %v1515
    %1517 = vmatpush1.msra.mxu0 %v1516
    %1518 = vmatprep.subr.mxu0 0.0
    %v1519 = vand.u32 %v125, 4294901760
    %v1520 = vsub.f32 %v125, %v1519
    %1521 = vmatpush1.msra.mxu0 %v1520
    %1522 = vmatprep.subr.mxu0 0.0
    %v1523 = vand.u32 %v126, 4294901760
    %v1524 = vsub.f32 %v126, %v1523
    %1525 = vmatpush1.msra.mxu0 %v1524
    %1526 = vmatprep.subr.mxu0 0.0
    %v1527 = vand.u32 %v127, 4294901760
    %v1528 = vsub.f32 %v127, %v1527
    %1529 = vmatpush1.msra.mxu0 %v1528
    %1530 = vmatprep.subr.mxu0 0.0
    %v1531 = vand.u32 %v128, 4294901760
    %v1532 = vsub.f32 %v128, %v1531
    %1533 = vmatpush1.msra.mxu0 %v1532
    %1534 = vmatprep.subr.mxu0 0.0
    %v1535 = vand.u32 %v129, 4294901760
    %v1536 = vsub.f32 %v129, %v1535
    %1537 = vmatpush1.msra.mxu0 %v1536
    %1538 = vmatprep.subr.mxu0 0.0
    %v1539 = vand.u32 %v130, 4294901760
    %v1540 = vsub.f32 %v130, %v1539
    %1541 = vmatpush1.msra.mxu0 %v1540
    %1542 = vmatprep.subr.mxu0 0.0
    %v1543 = vand.u32 %v131, 4294901760
    %v1544 = vsub.f32 %v131, %v1543
    %1545 = vmatpush1.msra.mxu0 %v1544
    %1546 = vmatprep.subr.mxu0 0.0
    %v1547 = vand.u32 %v132, 4294901760
    %v1548 = vsub.f32 %v132, %v1547
    %1549 = vmatpush1.msra.mxu0 %v1548
    %1550 = vmatprep.subr.mxu0 0.0
    %1551 = vmatpush1.msra.mxu0 0.0
    %1552 = vmatprep.subr.mxu0 0.0
    %1553 = vmatpush1.msra.mxu0 0.0
    %1554 = vmatprep.subr.mxu0 0.0
    %1555 = vmatpush1.msra.mxu0 0.0
    %1556 = vmatprep.subr.mxu0 0.0
    %1557 = vmatpush1.msra.mxu0 0.0
    %1558 = vmatprep.subr.mxu0 0.0
    %1559 = vmatpush1.msra.mxu0 0.0
    %1560 = vmatprep.subr.mxu0 0.0
    %1561 = vmatpush1.msra.mxu0 0.0
    %1562 = vmatprep.subr.mxu0 0.0
    %1563 = vmatpush1.msra.mxu0 0.0
    %1564 = vmatprep.subr.mxu0 0.0
    %1565 = vmatpush1.msra.mxu0 0.0
    %1566 = vmatprep.subr.mxu0 0.0
    %1567 = vmatpush1.msra.mxu0 0.0
    %1568 = vmatprep.subr.mxu0 0.0
    %1569 = vmatpush1.msra.mxu0 0.0
    %1570 = vmatprep.subr.mxu0 0.0
    %1571 = vmatpush1.msra.mxu0 0.0
    %1572 = vmatprep.subr.mxu0 0.0
    %1573 = vmatpush1.msra.mxu0 0.0
    %1574 = vmatprep.subr.mxu0 0.0
    %1575 = vmatpush1.msra.mxu0 0.0
    %1576 = vmatprep.subr.mxu0 0.0
    %1577 = vmatpush1.msra.mxu0 0.0
    %1578 = vmatprep.subr.mxu0 0.0
    %1579 = vmatpush1.msra.mxu0 0.0
    %1580 = vmatprep.subr.mxu0 0.0
    %1581 = vmatpush1.msra.mxu0 0.0
    %1582 = vmatprep.mubr.f32.mxu0 0.0
    %v1583 = vand.u32 %v1243, 4294901760
    %v1584 = vsub.f32 %v1243, %v1583
    %1585 = vmatmul.mubr.f32.gmra.mrb[0].mxu0 %v1584
    %v1586 = vpop.f32.mrb[0].mxu0
    %v1587 = vadd.f32 %v1483, %v1586
    %v1588 = vpop.f32.mrb[0].mxu0
    %1589 = vdwg.mxu0
    %1590 = vmatprep.subr.mxu0 0.0
    %v1591 = vand.u32 %v117, 4294901760
    %1592 = vmatpush1.msra.mxu0 %v1591
    %1593 = vmatprep.subr.mxu0 0.0
    %v1594 = vand.u32 %v118, 4294901760
    %1595 = vmatpush1.msra.mxu0 %v1594
    %1596 = vmatprep.subr.mxu0 0.0
    %v1597 = vand.u32 %v119, 4294901760
    %1598 = vmatpush1.msra.mxu0 %v1597
    %1599 = vmatprep.subr.mxu0 0.0
    %v1600 = vand.u32 %v120, 4294901760
    %1601 = vmatpush1.msra.mxu0 %v1600
    %1602 = vmatprep.subr.mxu0 0.0
    %v1603 = vand.u32 %v121, 4294901760
    %1604 = vmatpush1.msra.mxu0 %v1603
    %1605 = vmatprep.subr.mxu0 0.0
    %v1606 = vand.u32 %v122, 4294901760
    %1607 = vmatpush1.msra.mxu0 %v1606
    %1608 = vmatprep.subr.mxu0 0.0
    %v1609 = vand.u32 %v123, 4294901760
    %1610 = vmatpush1.msra.mxu0 %v1609
    %1611 = vmatprep.subr.mxu0 0.0
    %v1612 = vand.u32 %v124, 4294901760
    %1613 = vmatpush1.msra.mxu0 %v1612
    %1614 = vmatprep.subr.mxu0 0.0
    %v1615 = vand.u32 %v125, 4294901760
    %1616 = vmatpush1.msra.mxu0 %v1615
    %1617 = vmatprep.subr.mxu0 0.0
    %v1618 = vand.u32 %v126, 4294901760
    %1619 = vmatpush1.msra.mxu0 %v1618
    %1620 = vmatprep.subr.mxu0 0.0
    %v1621 = vand.u32 %v127, 4294901760
    %1622 = vmatpush1.msra.mxu0 %v1621
    %1623 = vmatprep.subr.mxu0 0.0
    %v1624 = vand.u32 %v128, 4294901760
    %1625 = vmatpush1.msra.mxu0 %v1624
    %1626 = vmatprep.subr.mxu0 0.0
    %v1627 = vand.u32 %v129, 4294901760
    %1628 = vmatpush1.msra.mxu0 %v1627
    %1629 = vmatprep.subr.mxu0 0.0
    %v1630 = vand.u32 %v130, 4294901760
    %1631 = vmatpush1.msra.mxu0 %v1630
    %1632 = vmatprep.subr.mxu0 0.0
    %v1633 = vand.u32 %v131, 4294901760
    %1634 = vmatpush1.msra.mxu0 %v1633
    %1635 = vmatprep.subr.mxu0 0.0
    %v1636 = vand.u32 %v132, 4294901760
    %1637 = vmatpush1.msra.mxu0 %v1636
    %1638 = vmatprep.subr.mxu0 0.0
    %1639 = vmatpush1.msra.mxu0 0.0
    %1640 = vmatprep.subr.mxu0 0.0
    %1641 = vmatpush1.msra.mxu0 0.0
    %1642 = vmatprep.subr.mxu0 0.0
    %1643 = vmatpush1.msra.mxu0 0.0
    %1644 = vmatprep.subr.mxu0 0.0
    %1645 = vmatpush1.msra.mxu0 0.0
    %1646 = vmatprep.subr.mxu0 0.0
    %1647 = vmatpush1.msra.mxu0 0.0
    %1648 = vmatprep.subr.mxu0 0.0
    %1649 = vmatpush1.msra.mxu0 0.0
    %1650 = vmatprep.subr.mxu0 0.0
    %1651 = vmatpush1.msra.mxu0 0.0
    %1652 = vmatprep.subr.mxu0 0.0
    %1653 = vmatpush1.msra.mxu0 0.0
    %1654 = vmatprep.subr.mxu0 0.0
    %1655 = vmatpush1.msra.mxu0 0.0
    %1656 = vmatprep.subr.mxu0 0.0
    %1657 = vmatpush1.msra.mxu0 0.0
    %1658 = vmatprep.subr.mxu0 0.0
    %1659 = vmatpush1.msra.mxu0 0.0
    %1660 = vmatprep.subr.mxu0 0.0
    %1661 = vmatpush1.msra.mxu0 0.0
    %1662 = vmatprep.subr.mxu0 0.0
    %1663 = vmatpush1.msra.mxu0 0.0
    %1664 = vmatprep.subr.mxu0 0.0
    %1665 = vmatpush1.msra.mxu0 0.0
    %1666 = vmatprep.subr.mxu0 0.0
    %1667 = vmatpush1.msra.mxu0 0.0
    %1668 = vmatprep.subr.mxu0 0.0
    %1669 = vmatpush1.msra.mxu0 0.0
    %1670 = vmatprep.mubr.f32.mxu0 0.0
    %v1671 = vand.u32 %v1243, 4294901760
    %v1672 = vsub.f32 %v1243, %v1671
    %v1673 = vand.u32 %v1672, 4294901760
    %1674 = vmatmul.mubr.f32.gmra.mrb[0].mxu0 %v1673
    %v1675 = vpop.f32.mrb[0].mxu0
    %v1676 = vadd.f32 %v1587, %v1675
    %v1677 = vpop.f32.mrb[0].mxu0
    %1678 = vdwg.mxu0
    %1679 = vmatprep.subr.mxu0 0.0
    %v1680 = vand.u32 %v117, 4294901760
    %v1681 = vsub.f32 %v117, %v1680
    %v1682 = vand.u32 %v1681, 4294901760
    %1683 = vmatpush1.msra.mxu0 %v1682
    %1684 = vmatprep.subr.mxu0 0.0
    %v1685 = vand.u32 %v118, 4294901760
    %v1686 = vsub.f32 %v118, %v1685
    %v1687 = vand.u32 %v1686, 4294901760
    %1688 = vmatpush1.msra.mxu0 %v1687
    %1689 = vmatprep.subr.mxu0 0.0
    %v1690 = vand.u32 %v119, 4294901760
    %v1691 = vsub.f32 %v119, %v1690
    %v1692 = vand.u32 %v1691, 4294901760
    %1693 = vmatpush1.msra.mxu0 %v1692
    %1694 = vmatprep.subr.mxu0 0.0
    %v1695 = vand.u32 %v120, 4294901760
    %v1696 = vsub.f32 %v120, %v1695
    %v1697 = vand.u32 %v1696, 4294901760
    %1698 = vmatpush1.msra.mxu0 %v1697
    %1699 = vmatprep.subr.mxu0 0.0
    %v1700 = vand.u32 %v121, 4294901760
    %v1701 = vsub.f32 %v121, %v1700
    %v1702 = vand.u32 %v1701, 4294901760
    %1703 = vmatpush1.msra.mxu0 %v1702
    %1704 = vmatprep.subr.mxu0 0.0
    %v1705 = vand.u32 %v122, 4294901760
    %v1706 = vsub.f32 %v122, %v1705
    %v1707 = vand.u32 %v1706, 4294901760
    %1708 = vmatpush1.msra.mxu0 %v1707
    %1709 = vmatprep.subr.mxu0 0.0
    %v1710 = vand.u32 %v123, 4294901760
    %v1711 = vsub.f32 %v123, %v1710
    %v1712 = vand.u32 %v1711, 4294901760
    %1713 = vmatpush1.msra.mxu0 %v1712
    %1714 = vmatprep.subr.mxu0 0.0
    %v1715 = vand.u32 %v124, 4294901760
    %v1716 = vsub.f32 %v124, %v1715
    %v1717 = vand.u32 %v1716, 4294901760
    %1718 = vmatpush1.msra.mxu0 %v1717
    %1719 = vmatprep.subr.mxu0 0.0
    %v1720 = vand.u32 %v125, 4294901760
    %v1721 = vsub.f32 %v125, %v1720
    %v1722 = vand.u32 %v1721, 4294901760
    %1723 = vmatpush1.msra.mxu0 %v1722
    %1724 = vmatprep.subr.mxu0 0.0
    %v1725 = vand.u32 %v126, 4294901760
    %v1726 = vsub.f32 %v126, %v1725
    %v1727 = vand.u32 %v1726, 4294901760
    %1728 = vmatpush1.msra.mxu0 %v1727
    %1729 = vmatprep.subr.mxu0 0.0
    %v1730 = vand.u32 %v127, 4294901760
    %v1731 = vsub.f32 %v127, %v1730
    %v1732 = vand.u32 %v1731, 4294901760
    %1733 = vmatpush1.msra.mxu0 %v1732
    %1734 = vmatprep.subr.mxu0 0.0
    %v1735 = vand.u32 %v128, 4294901760
    %v1736 = vsub.f32 %v128, %v1735
    %v1737 = vand.u32 %v1736, 4294901760
    %1738 = vmatpush1.msra.mxu0 %v1737
    %1739 = vmatprep.subr.mxu0 0.0
    %v1740 = vand.u32 %v129, 4294901760
    %v1741 = vsub.f32 %v129, %v1740
    %v1742 = vand.u32 %v1741, 4294901760
    %1743 = vmatpush1.msra.mxu0 %v1742
    %1744 = vmatprep.subr.mxu0 0.0
    %v1745 = vand.u32 %v130, 4294901760
    %v1746 = vsub.f32 %v130, %v1745
    %v1747 = vand.u32 %v1746, 4294901760
    %1748 = vmatpush1.msra.mxu0 %v1747
    %1749 = vmatprep.subr.mxu0 0.0
    %v1750 = vand.u32 %v131, 4294901760
    %v1751 = vsub.f32 %v131, %v1750
    %v1752 = vand.u32 %v1751, 4294901760
    %1753 = vmatpush1.msra.mxu0 %v1752
    %1754 = vmatprep.subr.mxu0 0.0
    %v1755 = vand.u32 %v132, 4294901760
    %v1756 = vsub.f32 %v132, %v1755
    %v1757 = vand.u32 %v1756, 4294901760
    %1758 = vmatpush1.msra.mxu0 %v1757
    %1759 = vmatprep.subr.mxu0 0.0
    %1760 = vmatpush1.msra.mxu0 0.0
    %1761 = vmatprep.subr.mxu0 0.0
    %1762 = vmatpush1.msra.mxu0 0.0
    %1763 = vmatprep.subr.mxu0 0.0
    %1764 = vmatpush1.msra.mxu0 0.0
    %1765 = vmatprep.subr.mxu0 0.0
    %1766 = vmatpush1.msra.mxu0 0.0
    %1767 = vmatprep.subr.mxu0 0.0
    %1768 = vmatpush1.msra.mxu0 0.0
    %1769 = vmatprep.subr.mxu0 0.0
    %1770 = vmatpush1.msra.mxu0 0.0
    %1771 = vmatprep.subr.mxu0 0.0
    %1772 = vmatpush1.msra.mxu0 0.0
    %1773 = vmatprep.subr.mxu0 0.0
    %1774 = vmatpush1.msra.mxu0 0.0
    %1775 = vmatprep.subr.mxu0 0.0
    %1776 = vmatpush1.msra.mxu0 0.0
    %1777 = vmatprep.subr.mxu0 0.0
    %1778 = vmatpush1.msra.mxu0 0.0
    %1779 = vmatprep.subr.mxu0 0.0
    %1780 = vmatpush1.msra.mxu0 0.0
    %1781 = vmatprep.subr.mxu0 0.0
    %1782 = vmatpush1.msra.mxu0 0.0
    %1783 = vmatprep.subr.mxu0 0.0
    %1784 = vmatpush1.msra.mxu0 0.0
    %1785 = vmatprep.subr.mxu0 0.0
    %1786 = vmatpush1.msra.mxu0 0.0
    %1787 = vmatprep.subr.mxu0 0.0
    %1788 = vmatpush1.msra.mxu0 0.0
    %1789 = vmatprep.subr.mxu0 0.0
    %1790 = vmatpush1.msra.mxu0 0.0
    %1791 = vmatprep.mubr.f32.mxu0 0.0
    %v1792 = vand.u32 %v1243, 4294901760
    %1793 = vmatmul.mubr.f32.gmra.mrb[0].mxu0 %v1792
    %v1794 = vpop.f32.mrb[0].mxu0
    %v1795 = vadd.f32 %v1676, %v1794
    %v1796 = vpop.f32.mrb[0].mxu0
    %1797 = vdwg.mxu0
    %1798 = vmatprep.subr.mxu0 0.0
    %v1799 = vand.u32 %v117, 4294901760
    %1800 = vmatpush1.msra.mxu0 %v1799
    %1801 = vmatprep.subr.mxu0 0.0
    %v1802 = vand.u32 %v118, 4294901760
    %1803 = vmatpush1.msra.mxu0 %v1802
    %1804 = vmatprep.subr.mxu0 0.0
    %v1805 = vand.u32 %v119, 4294901760
    %1806 = vmatpush1.msra.mxu0 %v1805
    %1807 = vmatprep.subr.mxu0 0.0
    %v1808 = vand.u32 %v120, 4294901760
    %1809 = vmatpush1.msra.mxu0 %v1808
    %1810 = vmatprep.subr.mxu0 0.0
    %v1811 = vand.u32 %v121, 4294901760
    %1812 = vmatpush1.msra.mxu0 %v1811
    %1813 = vmatprep.subr.mxu0 0.0
    %v1814 = vand.u32 %v122, 4294901760
    %1815 = vmatpush1.msra.mxu0 %v1814
    %1816 = vmatprep.subr.mxu0 0.0
    %v1817 = vand.u32 %v123, 4294901760
    %1818 = vmatpush1.msra.mxu0 %v1817
    %1819 = vmatprep.subr.mxu0 0.0
    %v1820 = vand.u32 %v124, 4294901760
    %1821 = vmatpush1.msra.mxu0 %v1820
    %1822 = vmatprep.subr.mxu0 0.0
    %v1823 = vand.u32 %v125, 4294901760
    %1824 = vmatpush1.msra.mxu0 %v1823
    %1825 = vmatprep.subr.mxu0 0.0
    %v1826 = vand.u32 %v126, 4294901760
    %1827 = vmatpush1.msra.mxu0 %v1826
    %1828 = vmatprep.subr.mxu0 0.0
    %v1829 = vand.u32 %v127, 4294901760
    %1830 = vmatpush1.msra.mxu0 %v1829
    %1831 = vmatprep.subr.mxu0 0.0
    %v1832 = vand.u32 %v128, 4294901760
    %1833 = vmatpush1.msra.mxu0 %v1832
    %1834 = vmatprep.subr.mxu0 0.0
    %v1835 = vand.u32 %v129, 4294901760
    %1836 = vmatpush1.msra.mxu0 %v1835
    %1837 = vmatprep.subr.mxu0 0.0
    %v1838 = vand.u32 %v130, 4294901760
    %1839 = vmatpush1.msra.mxu0 %v1838
    %1840 = vmatprep.subr.mxu0 0.0
    %v1841 = vand.u32 %v131, 4294901760
    %1842 = vmatpush1.msra.mxu0 %v1841
    %1843 = vmatprep.subr.mxu0 0.0
    %v1844 = vand.u32 %v132, 4294901760
    %1845 = vmatpush1.msra.mxu0 %v1844
    %1846 = vmatprep.subr.mxu0 0.0
    %1847 = vmatpush1.msra.mxu0 0.0
    %1848 = vmatprep.subr.mxu0 0.0
    %1849 = vmatpush1.msra.mxu0 0.0
    %1850 = vmatprep.subr.mxu0 0.0
    %1851 = vmatpush1.msra.mxu0 0.0
    %1852 = vmatprep.subr.mxu0 0.0
    %1853 = vmatpush1.msra.mxu0 0.0
    %1854 = vmatprep.subr.mxu0 0.0
    %1855 = vmatpush1.msra.mxu0 0.0
    %1856 = vmatprep.subr.mxu0 0.0
    %1857 = vmatpush1.msra.mxu0 0.0
    %1858 = vmatprep.subr.mxu0 0.0
    %1859 = vmatpush1.msra.mxu0 0.0
    %1860 = vmatprep.subr.mxu0 0.0
    %1861 = vmatpush1.msra.mxu0 0.0
    %1862 = vmatprep.subr.mxu0 0.0
    %1863 = vmatpush1.msra.mxu0 0.0
    %1864 = vmatprep.subr.mxu0 0.0
    %1865 = vmatpush1.msra.mxu0 0.0
    %1866 = vmatprep.subr.mxu0 0.0
    %1867 = vmatpush1.msra.mxu0 0.0
    %1868 = vmatprep.subr.mxu0 0.0
    %1869 = vmatpush1.msra.mxu0 0.0
    %1870 = vmatprep.subr.mxu0 0.0
    %1871 = vmatpush1.msra.mxu0 0.0
    %1872 = vmatprep.subr.mxu0 0.0
    %1873 = vmatpush1.msra.mxu0 0.0
    %1874 = vmatprep.subr.mxu0 0.0
    %1875 = vmatpush1.msra.mxu0 0.0
    %1876 = vmatprep.subr.mxu0 0.0
    %1877 = vmatpush1.msra.mxu0 0.0
    %1878 = vmatprep.mubr.f32.mxu0 0.0
    %v1879 = vand.u32 %v1243, 4294901760
    %1880 = vmatmul.mubr.f32.gmra.mrb[0].mxu0 %v1879
    %v1881 = vpop.f32.mrb[0].mxu0
    %v1882 = vadd.f32 %v1795, %v1881
    %v1883 = vpop.f32.mrb[0].mxu0
    %1884 = vdwg.mxu0
    %v1885 = vsub.f32 %v789, %v1882
    %v1886 = vsub.f32 %v1882, %v789
    %v1887 = vmul.f32 %v1886, 1.442695
    %v1888 = vpow.pop %v1887
    %v1889 = vmax.f32 %v1888, 1e-07
    %v1890 = vmin.f32 %v1889, 0.9999999
    %v1891 = vsub.f32 1.0, %v1890
    %v1892 = vmul.f32 %v1891, %v1891
    %v1893 = vmul.f32 %v1892, %v1885
    %s1894 = sadd.s32 0, 0
    %v1895 = vstv %s1894
    %v1896 = vadd.s32 %v1895, %v51
    %v1897 = vmul.u32 %v1896, 8
    %v1898 = vadd.s32 %v1897, %v68
    %vm1899 = vcmp.lt.s32.totalorder %v1898, 8
    %v1900 = vsel %vm1899, %v1893, 0.0
    %v1901 = vld [vmem:[#allocation2] sm:$0x1]
    %v1902 = vadd.f32 %v1901, %v1900
    %vm1903 = vcmask 57344
    %1904 = vst.msk [vmem:[#allocation2] sm:$0x1] %vm1903, %v1902
    // Predicated region
    $region18: #{tpu_custom_call.1} parent=1 // pred_check
      %p1905 = pneg %p42
    $region19: #{tpu_custom_call.1} parent=1 // pred_check_branch
      %1907 = sbr.rel (%p1905) target = $region21
    $region20: #{tpu_custom_call.1} parent=1 // pred_region
      %v1908 = vld [vmem:[#allocation2] sm:$0x1]
      %v1909 = vsel %vm1903, %v1908, 0.0
      %1910 = vadd.xlane.f32.xlu0 %v1909
      %v1911 = vpop.xlane.xlu0 %1910
      %v1912 = vrot.slane %v1911, 4
      %v1913 = vadd.f32 %v1911, %v1912
      %v1914 = vrot.slane %v1913, 2
      %v1915 = vadd.f32 %v1913, %v1914
      %v1916 = vrot.slane %v1915, 1
      %v1917 = vadd.f32 %v1915, %v1916
      %s1918 = vtos %v1917
      %vm1919 = vcmp.eq.s32.totalorder %v51, 0
      %vm1920 = vcmp.eq.s32.totalorder %v68, 0
      %vm1921 = vmand %vm1919, %vm1920
      %v1922 = vstv %s1918
      %v1923 = vsel %vm1921, %v1922, 0.0
      %1924 = vst [vmem:[#allocation6] sm:$0xff] %v1923
    $region21: #{tpu_custom_call.1} parent=1 // pred_fallthru
      _
    // Predicated region
    $region22: #{tpu_custom_call.1} parent=1 // pred_check
      _
    $region23: #{tpu_custom_call.1} parent=1 // pred_check_branch
      %1926 = sbr.rel (0) target = $region25
    $region24: #{tpu_custom_call.1} parent=1 // pred_region
      %s1928 = ssub.s32 128, 128
      %1929 = vsyncadd [#allocation5], %s1928
      %s1931 = sshll.u32 [#allocation6], 4
      %s1932 = int_to_ptr.vmem [resolvable:$true] %s1931
      %1934 = dma.vmem_to_hbm [thread:$0]  %s1932, 128, %s2, [#allocation5]
    $region25: #{tpu_custom_call.1} parent=1 // pred_fallthru
      _
    // Predicated region
    $region26: #{tpu_custom_call.1} parent=1 // pred_check
      _
    $region27: #{tpu_custom_call.1} parent=1 // pred_check_branch
      %1936 = sbr.rel (0) target = $region29
    $region28: #{tpu_custom_call.1} parent=1 // pred_region
      %1937 = dma.done [#allocation5], 128
    $region29: #{tpu_custom_call.1} parent=1 // pred_fallthru
      _
    %1938 = vsyncpa [#allocation4], 1
    %1939 = vsyncpa [#allocation5], 1

</llo_original>
